<compile_context>
chip_gen: v5e
topology: v5e:2x2
jax: 0.10.0
libtpu: 0.0.40
codegen_flags: <defaults>
</compile_context>

<pallas_src>
import functools

import numpy as np
import jax
import jax.numpy as jnp
from jax.experimental import pallas as pl
from jax.experimental.pallas import tpu as pltpu

EMBED_SIZE = 512
HIDDEN_SIZE = 128
NLAYERS = 3


# --------------------------- fused forward kernel ----------------------------
def _fused_lm_kernel(x_ref,
                     wih0_ref, whh0_ref, b0_ref,
                     wih1_ref, whh1_ref, b1_ref,
                     wih2_ref, whh2_ref, b2_ref,
                     scw_ref, scb_ref,
                     out_ref, *, S, N, H):
    """Single-invocation kernel (no grid): all operands resident in VMEM.

    x_ref   : (S*N, E)   layer-0 inputs, rows ordered step-major (s*N + n)
    wih*_ref: (D_in, 4H) per-layer input weights  (pre-transposed)
    whh*_ref: (H, 4H)    per-layer recurrent weights (pre-transposed)
    b*_ref  : (1, 4H)    combined b_ih + b_hh
    scw_ref : (H, V), scb_ref: (1, V)
    out_ref : (S*N, V)   scores, rows ordered step-major
    """

    def run_layer(x_all, wih_ref, whh_ref, b_ref):
        # Hoisted input projection + bias: one MXU matmul over all S*N rows,
        # off the serial critical path.
        gates_in = (jnp.dot(x_all, wih_ref[...],
                            preferred_element_type=jnp.float32) + b_ref[...])
        h = jnp.zeros((N, H), jnp.float32)
        c = jnp.zeros((N, H), jnp.float32)
        hs = []
        # Recurrence has only S steps (S == B == 2 here); unrolled at trace
        # time.  Per step: one (N,H)x(H,4H) MXU matmul + elementwise gates.
        for s in range(S):
            g = gates_in[s * N:(s + 1) * N, :] + jnp.dot(
                h, whh_ref[...], preferred_element_type=jnp.float32)
            i = jax.nn.sigmoid(g[:, 0:H])
            f = jax.nn.sigmoid(g[:, H:2 * H])
            gg = jnp.tanh(g[:, 2 * H:3 * H])
            o = jax.nn.sigmoid(g[:, 3 * H:4 * H])
            c = f * c + i * gg
            h = o * jnp.tanh(c)
            hs.append(h)
        return jnp.concatenate(hs, axis=0)            # (S*N, H), step-major

    y = run_layer(x_ref[...], wih0_ref, whh0_ref, b0_ref)
    y = run_layer(y, wih1_ref, whh1_ref, b1_ref)
    y = run_layer(y, wih2_ref, whh2_ref, b2_ref)

    # Final Linear fused in: one (S*N, H) x (H, V) matmul, single lane-dense
    # store.
    out_ref[...] = (jnp.dot(y, scw_ref[...],
                            preferred_element_type=jnp.float32) + scb_ref[...])


# ------------------------------ Model forward --------------------------------
def language_model_forward(params, x):
    """x: (T, B) int32 token ids. Returns (T, B, vocab) float32."""
    T, B = x.shape
    E = params["embedding"].shape[1]
    V = params["score_w_t"].shape[1]

    # Embedding lookup (data-dependent gather -> left to XLA glue).  Gathering
    # with transposed indices directly produces what
    # `embedding(x).permute(1, 0, 2)` would, so no activation transpose or
    # extra HBM round-trip is needed (perf-review item 3).
    embed = jnp.take(params["embedding"], x.T, axis=0)        # (B, T, E)
    x0 = embed.reshape(B * T, E).astype(jnp.float32)          # rows: b*T + t

    kernel = functools.partial(_fused_lm_kernel, S=B, N=T, H=HIDDEN_SIZE)

    # No grid: single invocation.  Omitted BlockSpecs default to whole-array
    # blocks, so every operand (~2.5 MiB of weights + 32 KiB activations) is
    # DMA'd to VMEM once and stays resident — fits v5e/v6e (128 MiB) and v7x
    # (64 MiB/TC) with large headroom.
    # NOTE: per-step matmuls only have N=T=8 rows, so the MXU is heavily
    # under-utilized; at these toy shapes the model is launch/latency bound
    # and the fusion above is the lever.  If the batch dim (T) grows, add a
    # leading "parallel" grid axis over batch rows (shards across v7x's 2 TCs).
    flat = pl.pallas_call(
        kernel,
        out_shape=jax.ShapeDtypeStruct((B * T, V), jnp.float32),
    )(x0,
      params["w_ih_t"][0], params["w_hh_t"][0], params["b"][0],
      params["w_ih_t"][1], params["w_hh_t"][1], params["b"][1],
      params["w_ih_t"][2], params["w_hh_t"][2], params["b"][2],
      params["score_w_t"], params["score_b"])

    return flat.reshape(-1, B, V)       # == .view(-1, batch_size, vocab_size)


# ---------------------------- Pure-JAX reference ------------------------------
def _lstm_layer_ref(x, w_ih_t, w_hh_t, b):
    S, N, _ = x.shape
    H = w_hh_t.shape[0]
    h = jnp.zeros((N, H), jnp.float32)
    c = jnp.zeros((N, H), jnp.float32)
    outs = []
    hp = jax.lax.Precision.HIGHEST
    for s in range(S):
        gates = (jnp.dot(x[s], w_ih_t, precision=hp)
                 + jnp.dot(h, w_hh_t, precision=hp) + b)
        i = jax.nn.sigmoid(gates[:, 0:H])
        f = jax.nn.sigmoid(gates[:, H:2 * H])
        g = jnp.tanh(gates[:, 2 * H:3 * H])
        o = jax.nn.sigmoid(gates[:, 3 * H:4 * H])
        c = f * c + i * g
        h = o * jnp.tanh(c)
        outs.append(h)
    return jnp.stack(outs)


def language_model_ref(params, x):
    T, B = x.shape
    embed = jnp.take(params["embedding"], x, axis=0)
    out = jnp.transpose(embed, (1, 0, 2)).astype(jnp.float32)
    for layer in range(NLAYERS):
        out = _lstm_layer_ref(out, params["w_ih_t"][layer],
                              params["w_hh_t"][layer], params["b"][layer])
    out_flat = out.reshape(-1, HIDDEN_SIZE)
    scores = (jnp.dot(out_flat, params["score_w_t"],
                      precision=jax.lax.Precision.HIGHEST) + params["score_b"])
    return scores.reshape(-1, B, scores.shape[-1])


# ------------------------------- Param init ------------------------------------
def init_params(key, vocab_size):
    keys = jax.random.split(key, 2 + 4 * NLAYERS + 2)
    k_iter = iter(keys)
    scale = 1.0 / np.sqrt(HIDDEN_SIZE)

    params = {}
    params["embedding"] = jax.random.normal(
        next(k_iter), (vocab_size, EMBED_SIZE), jnp.float32)  # nn.Embedding ~ N(0,1)

    w_ih_t, w_hh_t, biases = [], [], []
    for layer in range(NLAYERS):
        d_in = EMBED_SIZE if layer == 0 else HIDDEN_SIZE
        # PyTorch stores W_ih: (4H, d_in); we pre-transpose to (d_in, 4H).
        w_ih = jax.random.uniform(next(k_iter), (4 * HIDDEN_SIZE, d_in),
                                  jnp.float32, -scale, scale)
        w_hh = jax.random.uniform(next(k_iter), (4 * HIDDEN_SIZE, HIDDEN_SIZE),
                                  jnp.float32, -scale, scale)
        b_ih = jax.random.uniform(next(k_iter), (4 * HIDDEN_SIZE,),
                                  jnp.float32, -scale, scale)
        b_hh = jax.random.uniform(next(k_iter), (4 * HIDDEN_SIZE,),
                                  jnp.float32, -scale, scale)
        w_ih_t.append(w_ih.T)
        w_hh_t.append(w_hh.T)
        biases.append((b_ih + b_hh).reshape(1, -1))
    params["w_ih_t"] = w_ih_t
    params["w_hh_t"] = w_hh_t
    params["b"] = biases

    score_w = jax.random.uniform(next(k_iter), (vocab_size, HIDDEN_SIZE),
                                 jnp.float32, -scale, scale)
    score_b = jax.random.uniform(next(k_iter), (vocab_size,),
                                 jnp.float32, -scale, scale)
    params["score_w_t"] = score_w.T
    params["score_b"] = score_b.reshape(1, -1)
    return params


# ----------------------------------- Main --------------------------------------
if __name__ == "__main__":
    VOCAB = 256   # small synthetic vocab (lane-aligned)
    T, B = 8, 2   # x: (T, B); PyTorch code reads batch_size = x.size(1) = B

    key = jax.random.PRNGKey(0)
    k_params, k_x = jax.random.split(key)
    params = init_params(k_params, VOCAB)
    x = jax.random.randint(k_x, (T, B), 0, VOCAB, dtype=jnp.int32)

    fwd = jax.jit(language_model_forward)
    out = jax.block_until_ready(fwd(params, x))
    assert out.shape == (T, B, VOCAB), out.shape
    assert out.dtype == jnp.float32, out.dtype

    ref = jax.block_until_ready(language_model_ref(params, x))
    np.testing.assert_allclose(np.asarray(out), np.asarray(ref),
                               rtol=1e-3, atol=1e-3)

    print("KERNEL_OK")
</pallas_src>

<mosaic_0001>
module attributes {stable_mosaic.version = 11 : i64} {
  func.func @_fused_lm_kernel(%arg0: memref<16x512xf32, #tpu.memory_space<vmem>>, %arg1: memref<512x512xf32, #tpu.memory_space<vmem>>, %arg2: memref<128x512xf32, #tpu.memory_space<vmem>>, %arg3: memref<1x512xf32, #tpu.memory_space<vmem>>, %arg4: memref<128x512xf32, #tpu.memory_space<vmem>>, %arg5: memref<128x512xf32, #tpu.memory_space<vmem>>, %arg6: memref<1x512xf32, #tpu.memory_space<vmem>>, %arg7: memref<128x512xf32, #tpu.memory_space<vmem>>, %arg8: memref<128x512xf32, #tpu.memory_space<vmem>>, %arg9: memref<1x512xf32, #tpu.memory_space<vmem>>, %arg10: memref<128x256xf32, #tpu.memory_space<vmem>>, %arg11: memref<1x256xf32, #tpu.memory_space<vmem>>, %arg12: memref<16x256xf32, #tpu.memory_space<vmem>>) attributes {dimension_semantics = [], scalar_prefetch = 0 : i64, scratch_operands = 0 : i64, tpu.core_type = #tpu.core_type<tc>} {
    %c0 = arith.constant 0 : index
    %c0_0 = arith.constant 0 : index
    %0 = vector.load %arg0[%c0, %c0_0] : memref<16x512xf32, #tpu.memory_space<vmem>>, vector<16x512xf32>
    %c0_1 = arith.constant 0 : index
    %c0_2 = arith.constant 0 : index
    %1 = vector.load %arg1[%c0_1, %c0_2] : memref<512x512xf32, #tpu.memory_space<vmem>>, vector<512x512xf32>
    %cst = arith.constant dense<0.000000e+00> : vector<16x512xf32>
    %2 = tpu.matmul %0, %1, %cst {dimension_numbers = #tpu.dot_dimension_numbers<[1], [0], [0], [1], [0, 0, 1, 1], [], []>} : vector<16x512xf32>, vector<512x512xf32>, vector<16x512xf32> -> vector<16x512xf32>
    %c0_3 = arith.constant 0 : index
    %c0_4 = arith.constant 0 : index
    %3 = vector.load %arg3[%c0_3, %c0_4] : memref<1x512xf32, #tpu.memory_space<vmem>>, vector<1x512xf32>
    %4 = vector.broadcast %3 : vector<1x512xf32> to vector<16x512xf32>
    %5 = arith.addf %2, %4 : vector<16x512xf32>
    %cst_5 = arith.constant 0.000000e+00 : f32
    %6 = vector.broadcast %cst_5 : f32 to vector<8x128xf32>
    %cst_6 = arith.constant 0.000000e+00 : f32
    %7 = vector.broadcast %cst_6 : f32 to vector<8x128xf32>
    %8 = vector.extract_strided_slice %5 {offsets = [0, 0], sizes = [8, 512], strides = [1, 1]} : vector<16x512xf32> to vector<8x512xf32>
    %c0_7 = arith.constant 0 : index
    %c0_8 = arith.constant 0 : index
    %9 = vector.load %arg2[%c0_7, %c0_8] : memref<128x512xf32, #tpu.memory_space<vmem>>, vector<128x512xf32>
    %cst_9 = arith.constant dense<0.000000e+00> : vector<8x512xf32>
    %10 = tpu.matmul %6, %9, %cst_9 {dimension_numbers = #tpu.dot_dimension_numbers<[1], [0], [0], [1], [0, 0, 1, 1], [], []>} : vector<8x128xf32>, vector<128x512xf32>, vector<8x512xf32> -> vector<8x512xf32>
    %11 = arith.addf %8, %10 : vector<8x512xf32>
    %12 = vector.extract_strided_slice %11 {offsets = [0, 0], sizes = [8, 128], strides = [1, 1]} : vector<8x512xf32> to vector<8x128xf32>
    %13 = arith.negf %12 : vector<8x128xf32>
    %14 = math.exp %13 : vector<8x128xf32>
    %cst_10 = arith.constant 1.000000e+00 : f32
    %15 = vector.broadcast %cst_10 : f32 to vector<8x128xf32>
    %16 = arith.addf %15, %14 : vector<8x128xf32>
    %17 = arith.divf %15, %16 : vector<8x128xf32>
    %18 = vector.extract_strided_slice %11 {offsets = [0, 128], sizes = [8, 128], strides = [1, 1]} : vector<8x512xf32> to vector<8x128xf32>
    %19 = arith.negf %18 : vector<8x128xf32>
    %20 = math.exp %19 : vector<8x128xf32>
    %cst_11 = arith.constant 1.000000e+00 : f32
    %21 = vector.broadcast %cst_11 : f32 to vector<8x128xf32>
    %22 = arith.addf %21, %20 : vector<8x128xf32>
    %23 = arith.divf %21, %22 : vector<8x128xf32>
    %24 = vector.extract_strided_slice %11 {offsets = [0, 256], sizes = [8, 128], strides = [1, 1]} : vector<8x512xf32> to vector<8x128xf32>
    %25 = math.tanh %24 : vector<8x128xf32>
    %26 = vector.extract_strided_slice %11 {offsets = [0, 384], sizes = [8, 128], strides = [1, 1]} : vector<8x512xf32> to vector<8x128xf32>
    %27 = arith.negf %26 : vector<8x128xf32>
    %28 = math.exp %27 : vector<8x128xf32>
    %cst_12 = arith.constant 1.000000e+00 : f32
    %29 = vector.broadcast %cst_12 : f32 to vector<8x128xf32>
    %30 = arith.addf %29, %28 : vector<8x128xf32>
    %31 = arith.divf %29, %30 : vector<8x128xf32>
    %32 = arith.mulf %23, %7 : vector<8x128xf32>
    %33 = arith.mulf %17, %25 : vector<8x128xf32>
    %34 = arith.addf %32, %33 : vector<8x128xf32>
    %35 = math.tanh %34 : vector<8x128xf32>
    %36 = arith.mulf %31, %35 : vector<8x128xf32>
    %37 = vector.extract_strided_slice %5 {offsets = [8, 0], sizes = [8, 512], strides = [1, 1]} : vector<16x512xf32> to vector<8x512xf32>
    %c0_13 = arith.constant 0 : index
    %c0_14 = arith.constant 0 : index
    %38 = vector.load %arg2[%c0_13, %c0_14] : memref<128x512xf32, #tpu.memory_space<vmem>>, vector<128x512xf32>
    %cst_15 = arith.constant dense<0.000000e+00> : vector<8x512xf32>
    %39 = tpu.matmul %36, %38, %cst_15 {dimension_numbers = #tpu.dot_dimension_numbers<[1], [0], [0], [1], [0, 0, 1, 1], [], []>} : vector<8x128xf32>, vector<128x512xf32>, vector<8x512xf32> -> vector<8x512xf32>
    %40 = arith.addf %37, %39 : vector<8x512xf32>
    %41 = vector.extract_strided_slice %40 {offsets = [0, 0], sizes = [8, 128], strides = [1, 1]} : vector<8x512xf32> to vector<8x128xf32>
    %42 = arith.negf %41 : vector<8x128xf32>
    %43 = math.exp %42 : vector<8x128xf32>
    %cst_16 = arith.constant 1.000000e+00 : f32
    %44 = vector.broadcast %cst_16 : f32 to vector<8x128xf32>
    %45 = arith.addf %44, %43 : vector<8x128xf32>
    %46 = arith.divf %44, %45 : vector<8x128xf32>
    %47 = vector.extract_strided_slice %40 {offsets = [0, 128], sizes = [8, 128], strides = [1, 1]} : vector<8x512xf32> to vector<8x128xf32>
    %48 = arith.negf %47 : vector<8x128xf32>
    %49 = math.exp %48 : vector<8x128xf32>
    %cst_17 = arith.constant 1.000000e+00 : f32
    %50 = vector.broadcast %cst_17 : f32 to vector<8x128xf32>
    %51 = arith.addf %50, %49 : vector<8x128xf32>
    %52 = arith.divf %50, %51 : vector<8x128xf32>
    %53 = vector.extract_strided_slice %40 {offsets = [0, 256], sizes = [8, 128], strides = [1, 1]} : vector<8x512xf32> to vector<8x128xf32>
    %54 = math.tanh %53 : vector<8x128xf32>
    %55 = vector.extract_strided_slice %40 {offsets = [0, 384], sizes = [8, 128], strides = [1, 1]} : vector<8x512xf32> to vector<8x128xf32>
    %56 = arith.negf %55 : vector<8x128xf32>
    %57 = math.exp %56 : vector<8x128xf32>
    %cst_18 = arith.constant 1.000000e+00 : f32
    %58 = vector.broadcast %cst_18 : f32 to vector<8x128xf32>
    %59 = arith.addf %58, %57 : vector<8x128xf32>
    %60 = arith.divf %58, %59 : vector<8x128xf32>
    %61 = arith.mulf %52, %34 : vector<8x128xf32>
    %62 = arith.mulf %46, %54 : vector<8x128xf32>
    %63 = arith.addf %61, %62 : vector<8x128xf32>
    %64 = math.tanh %63 : vector<8x128xf32>
    %65 = arith.mulf %60, %64 : vector<8x128xf32>
    %66 = tpu.concatenate %36, %65 in 0 : vector<8x128xf32>, vector<8x128xf32> -> vector<16x128xf32>
    %c0_19 = arith.constant 0 : index
    %c0_20 = arith.constant 0 : index
    %67 = vector.load %arg4[%c0_19, %c0_20] : memref<128x512xf32, #tpu.memory_space<vmem>>, vector<128x512xf32>
    %cst_21 = arith.constant dense<0.000000e+00> : vector<16x512xf32>
    %68 = tpu.matmul %66, %67, %cst_21 {dimension_numbers = #tpu.dot_dimension_numbers<[1], [0], [0], [1], [0, 0, 1, 1], [], []>} : vector<16x128xf32>, vector<128x512xf32>, vector<16x512xf32> -> vector<16x512xf32>
    %c0_22 = arith.constant 0 : index
    %c0_23 = arith.constant 0 : index
    %69 = vector.load %arg6[%c0_22, %c0_23] : memref<1x512xf32, #tpu.memory_space<vmem>>, vector<1x512xf32>
    %70 = vector.broadcast %69 : vector<1x512xf32> to vector<16x512xf32>
    %71 = arith.addf %68, %70 : vector<16x512xf32>
    %cst_24 = arith.constant 0.000000e+00 : f32
    %72 = vector.broadcast %cst_24 : f32 to vector<8x128xf32>
    %cst_25 = arith.constant 0.000000e+00 : f32
    %73 = vector.broadcast %cst_25 : f32 to vector<8x128xf32>
    %74 = vector.extract_strided_slice %71 {offsets = [0, 0], sizes = [8, 512], strides = [1, 1]} : vector<16x512xf32> to vector<8x512xf32>
    %c0_26 = arith.constant 0 : index
    %c0_27 = arith.constant 0 : index
    %75 = vector.load %arg5[%c0_26, %c0_27] : memref<128x512xf32, #tpu.memory_space<vmem>>, vector<128x512xf32>
    %cst_28 = arith.constant dense<0.000000e+00> : vector<8x512xf32>
    %76 = tpu.matmul %72, %75, %cst_28 {dimension_numbers = #tpu.dot_dimension_numbers<[1], [0], [0], [1], [0, 0, 1, 1], [], []>} : vector<8x128xf32>, vector<128x512xf32>, vector<8x512xf32> -> vector<8x512xf32>
    %77 = arith.addf %74, %76 : vector<8x512xf32>
    %78 = vector.extract_strided_slice %77 {offsets = [0, 0], sizes = [8, 128], strides = [1, 1]} : vector<8x512xf32> to vector<8x128xf32>
    %79 = arith.negf %78 : vector<8x128xf32>
    %80 = math.exp %79 : vector<8x128xf32>
    %cst_29 = arith.constant 1.000000e+00 : f32
    %81 = vector.broadcast %cst_29 : f32 to vector<8x128xf32>
    %82 = arith.addf %81, %80 : vector<8x128xf32>
    %83 = arith.divf %81, %82 : vector<8x128xf32>
    %84 = vector.extract_strided_slice %77 {offsets = [0, 128], sizes = [8, 128], strides = [1, 1]} : vector<8x512xf32> to vector<8x128xf32>
    %85 = arith.negf %84 : vector<8x128xf32>
    %86 = math.exp %85 : vector<8x128xf32>
    %cst_30 = arith.constant 1.000000e+00 : f32
    %87 = vector.broadcast %cst_30 : f32 to vector<8x128xf32>
    %88 = arith.addf %87, %86 : vector<8x128xf32>
    %89 = arith.divf %87, %88 : vector<8x128xf32>
    %90 = vector.extract_strided_slice %77 {offsets = [0, 256], sizes = [8, 128], strides = [1, 1]} : vector<8x512xf32> to vector<8x128xf32>
    %91 = math.tanh %90 : vector<8x128xf32>
    %92 = vector.extract_strided_slice %77 {offsets = [0, 384], sizes = [8, 128], strides = [1, 1]} : vector<8x512xf32> to vector<8x128xf32>
    %93 = arith.negf %92 : vector<8x128xf32>
    %94 = math.exp %93 : vector<8x128xf32>
    %cst_31 = arith.constant 1.000000e+00 : f32
    %95 = vector.broadcast %cst_31 : f32 to vector<8x128xf32>
    %96 = arith.addf %95, %94 : vector<8x128xf32>
    %97 = arith.divf %95, %96 : vector<8x128xf32>
    %98 = arith.mulf %89, %73 : vector<8x128xf32>
    %99 = arith.mulf %83, %91 : vector<8x128xf32>
    %100 = arith.addf %98, %99 : vector<8x128xf32>
    %101 = math.tanh %100 : vector<8x128xf32>
    %102 = arith.mulf %97, %101 : vector<8x128xf32>
    %103 = vector.extract_strided_slice %71 {offsets = [8, 0], sizes = [8, 512], strides = [1, 1]} : vector<16x512xf32> to vector<8x512xf32>
    %c0_32 = arith.constant 0 : index
    %c0_33 = arith.constant 0 : index
    %104 = vector.load %arg5[%c0_32, %c0_33] : memref<128x512xf32, #tpu.memory_space<vmem>>, vector<128x512xf32>
    %cst_34 = arith.constant dense<0.000000e+00> : vector<8x512xf32>
    %105 = tpu.matmul %102, %104, %cst_34 {dimension_numbers = #tpu.dot_dimension_numbers<[1], [0], [0], [1], [0, 0, 1, 1], [], []>} : vector<8x128xf32>, vector<128x512xf32>, vector<8x512xf32> -> vector<8x512xf32>
    %106 = arith.addf %103, %105 : vector<8x512xf32>
    %107 = vector.extract_strided_slice %106 {offsets = [0, 0], sizes = [8, 128], strides = [1, 1]} : vector<8x512xf32> to vector<8x128xf32>
    %108 = arith.negf %107 : vector<8x128xf32>
    %109 = math.exp %108 : vector<8x128xf32>
    %cst_35 = arith.constant 1.000000e+00 : f32
    %110 = vector.broadcast %cst_35 : f32 to vector<8x128xf32>
    %111 = arith.addf %110, %109 : vector<8x128xf32>
    %112 = arith.divf %110, %111 : vector<8x128xf32>
    %113 = vector.extract_strided_slice %106 {offsets = [0, 128], sizes = [8, 128], strides = [1, 1]} : vector<8x512xf32> to vector<8x128xf32>
    %114 = arith.negf %113 : vector<8x128xf32>
    %115 = math.exp %114 : vector<8x128xf32>
    %cst_36 = arith.constant 1.000000e+00 : f32
    %116 = vector.broadcast %cst_36 : f32 to vector<8x128xf32>
    %117 = arith.addf %116, %115 : vector<8x128xf32>
    %118 = arith.divf %116, %117 : vector<8x128xf32>
    %119 = vector.extract_strided_slice %106 {offsets = [0, 256], sizes = [8, 128], strides = [1, 1]} : vector<8x512xf32> to vector<8x128xf32>
    %120 = math.tanh %119 : vector<8x128xf32>
    %121 = vector.extract_strided_slice %106 {offsets = [0, 384], sizes = [8, 128], strides = [1, 1]} : vector<8x512xf32> to vector<8x128xf32>
    %122 = arith.negf %121 : vector<8x128xf32>
    %123 = math.exp %122 : vector<8x128xf32>
    %cst_37 = arith.constant 1.000000e+00 : f32
    %124 = vector.broadcast %cst_37 : f32 to vector<8x128xf32>
    %125 = arith.addf %124, %123 : vector<8x128xf32>
    %126 = arith.divf %124, %125 : vector<8x128xf32>
    %127 = arith.mulf %118, %100 : vector<8x128xf32>
    %128 = arith.mulf %112, %120 : vector<8x128xf32>
    %129 = arith.addf %127, %128 : vector<8x128xf32>
    %130 = math.tanh %129 : vector<8x128xf32>
    %131 = arith.mulf %126, %130 : vector<8x128xf32>
    %132 = tpu.concatenate %102, %131 in 0 : vector<8x128xf32>, vector<8x128xf32> -> vector<16x128xf32>
    %c0_38 = arith.constant 0 : index
    %c0_39 = arith.constant 0 : index
    %133 = vector.load %arg7[%c0_38, %c0_39] : memref<128x512xf32, #tpu.memory_space<vmem>>, vector<128x512xf32>
    %cst_40 = arith.constant dense<0.000000e+00> : vector<16x512xf32>
    %134 = tpu.matmul %132, %133, %cst_40 {dimension_numbers = #tpu.dot_dimension_numbers<[1], [0], [0], [1], [0, 0, 1, 1], [], []>} : vector<16x128xf32>, vector<128x512xf32>, vector<16x512xf32> -> vector<16x512xf32>
    %c0_41 = arith.constant 0 : index
    %c0_42 = arith.constant 0 : index
    %135 = vector.load %arg9[%c0_41, %c0_42] : memref<1x512xf32, #tpu.memory_space<vmem>>, vector<1x512xf32>
    %136 = vector.broadcast %135 : vector<1x512xf32> to vector<16x512xf32>
    %137 = arith.addf %134, %136 : vector<16x512xf32>
    %cst_43 = arith.constant 0.000000e+00 : f32
    %138 = vector.broadcast %cst_43 : f32 to vector<8x128xf32>
    %cst_44 = arith.constant 0.000000e+00 : f32
    %139 = vector.broadcast %cst_44 : f32 to vector<8x128xf32>
    %140 = vector.extract_strided_slice %137 {offsets = [0, 0], sizes = [8, 512], strides = [1, 1]} : vector<16x512xf32> to vector<8x512xf32>
    %c0_45 = arith.constant 0 : index
    %c0_46 = arith.constant 0 : index
    %141 = vector.load %arg8[%c0_45, %c0_46] : memref<128x512xf32, #tpu.memory_space<vmem>>, vector<128x512xf32>
    %cst_47 = arith.constant dense<0.000000e+00> : vector<8x512xf32>
    %142 = tpu.matmul %138, %141, %cst_47 {dimension_numbers = #tpu.dot_dimension_numbers<[1], [0], [0], [1], [0, 0, 1, 1], [], []>} : vector<8x128xf32>, vector<128x512xf32>, vector<8x512xf32> -> vector<8x512xf32>
    %143 = arith.addf %140, %142 : vector<8x512xf32>
    %144 = vector.extract_strided_slice %143 {offsets = [0, 0], sizes = [8, 128], strides = [1, 1]} : vector<8x512xf32> to vector<8x128xf32>
    %145 = arith.negf %144 : vector<8x128xf32>
    %146 = math.exp %145 : vector<8x128xf32>
    %cst_48 = arith.constant 1.000000e+00 : f32
    %147 = vector.broadcast %cst_48 : f32 to vector<8x128xf32>
    %148 = arith.addf %147, %146 : vector<8x128xf32>
    %149 = arith.divf %147, %148 : vector<8x128xf32>
    %150 = vector.extract_strided_slice %143 {offsets = [0, 128], sizes = [8, 128], strides = [1, 1]} : vector<8x512xf32> to vector<8x128xf32>
    %151 = arith.negf %150 : vector<8x128xf32>
    %152 = math.exp %151 : vector<8x128xf32>
    %cst_49 = arith.constant 1.000000e+00 : f32
    %153 = vector.broadcast %cst_49 : f32 to vector<8x128xf32>
    %154 = arith.addf %153, %152 : vector<8x128xf32>
    %155 = arith.divf %153, %154 : vector<8x128xf32>
    %156 = vector.extract_strided_slice %143 {offsets = [0, 256], sizes = [8, 128], strides = [1, 1]} : vector<8x512xf32> to vector<8x128xf32>
    %157 = math.tanh %156 : vector<8x128xf32>
    %158 = vector.extract_strided_slice %143 {offsets = [0, 384], sizes = [8, 128], strides = [1, 1]} : vector<8x512xf32> to vector<8x128xf32>
    %159 = arith.negf %158 : vector<8x128xf32>
    %160 = math.exp %159 : vector<8x128xf32>
    %cst_50 = arith.constant 1.000000e+00 : f32
    %161 = vector.broadcast %cst_50 : f32 to vector<8x128xf32>
    %162 = arith.addf %161, %160 : vector<8x128xf32>
    %163 = arith.divf %161, %162 : vector<8x128xf32>
    %164 = arith.mulf %155, %139 : vector<8x128xf32>
    %165 = arith.mulf %149, %157 : vector<8x128xf32>
    %166 = arith.addf %164, %165 : vector<8x128xf32>
    %167 = math.tanh %166 : vector<8x128xf32>
    %168 = arith.mulf %163, %167 : vector<8x128xf32>
    %169 = vector.extract_strided_slice %137 {offsets = [8, 0], sizes = [8, 512], strides = [1, 1]} : vector<16x512xf32> to vector<8x512xf32>
    %c0_51 = arith.constant 0 : index
    %c0_52 = arith.constant 0 : index
    %170 = vector.load %arg8[%c0_51, %c0_52] : memref<128x512xf32, #tpu.memory_space<vmem>>, vector<128x512xf32>
    %cst_53 = arith.constant dense<0.000000e+00> : vector<8x512xf32>
    %171 = tpu.matmul %168, %170, %cst_53 {dimension_numbers = #tpu.dot_dimension_numbers<[1], [0], [0], [1], [0, 0, 1, 1], [], []>} : vector<8x128xf32>, vector<128x512xf32>, vector<8x512xf32> -> vector<8x512xf32>
    %172 = arith.addf %169, %171 : vector<8x512xf32>
    %173 = vector.extract_strided_slice %172 {offsets = [0, 0], sizes = [8, 128], strides = [1, 1]} : vector<8x512xf32> to vector<8x128xf32>
    %174 = arith.negf %173 : vector<8x128xf32>
    %175 = math.exp %174 : vector<8x128xf32>
    %cst_54 = arith.constant 1.000000e+00 : f32
    %176 = vector.broadcast %cst_54 : f32 to vector<8x128xf32>
    %177 = arith.addf %176, %175 : vector<8x128xf32>
    %178 = arith.divf %176, %177 : vector<8x128xf32>
    %179 = vector.extract_strided_slice %172 {offsets = [0, 128], sizes = [8, 128], strides = [1, 1]} : vector<8x512xf32> to vector<8x128xf32>
    %180 = arith.negf %179 : vector<8x128xf32>
    %181 = math.exp %180 : vector<8x128xf32>
    %cst_55 = arith.constant 1.000000e+00 : f32
    %182 = vector.broadcast %cst_55 : f32 to vector<8x128xf32>
    %183 = arith.addf %182, %181 : vector<8x128xf32>
    %184 = arith.divf %182, %183 : vector<8x128xf32>
    %185 = vector.extract_strided_slice %172 {offsets = [0, 256], sizes = [8, 128], strides = [1, 1]} : vector<8x512xf32> to vector<8x128xf32>
    %186 = math.tanh %185 : vector<8x128xf32>
    %187 = vector.extract_strided_slice %172 {offsets = [0, 384], sizes = [8, 128], strides = [1, 1]} : vector<8x512xf32> to vector<8x128xf32>
    %188 = arith.negf %187 : vector<8x128xf32>
    %189 = math.exp %188 : vector<8x128xf32>
    %cst_56 = arith.constant 1.000000e+00 : f32
    %190 = vector.broadcast %cst_56 : f32 to vector<8x128xf32>
    %191 = arith.addf %190, %189 : vector<8x128xf32>
    %192 = arith.divf %190, %191 : vector<8x128xf32>
    %193 = arith.mulf %184, %166 : vector<8x128xf32>
    %194 = arith.mulf %178, %186 : vector<8x128xf32>
    %195 = arith.addf %193, %194 : vector<8x128xf32>
    %196 = math.tanh %195 : vector<8x128xf32>
    %197 = arith.mulf %192, %196 : vector<8x128xf32>
    %198 = tpu.concatenate %168, %197 in 0 : vector<8x128xf32>, vector<8x128xf32> -> vector<16x128xf32>
    %c0_57 = arith.constant 0 : index
    %c0_58 = arith.constant 0 : index
    %199 = vector.load %arg10[%c0_57, %c0_58] : memref<128x256xf32, #tpu.memory_space<vmem>>, vector<128x256xf32>
    %cst_59 = arith.constant dense<0.000000e+00> : vector<16x256xf32>
    %200 = tpu.matmul %198, %199, %cst_59 {dimension_numbers = #tpu.dot_dimension_numbers<[1], [0], [0], [1], [0, 0, 1, 1], [], []>} : vector<16x128xf32>, vector<128x256xf32>, vector<16x256xf32> -> vector<16x256xf32>
    %c0_60 = arith.constant 0 : index
    %c0_61 = arith.constant 0 : index
    %201 = vector.load %arg11[%c0_60, %c0_61] : memref<1x256xf32, #tpu.memory_space<vmem>>, vector<1x256xf32>
    %202 = vector.broadcast %201 : vector<1x256xf32> to vector<16x256xf32>
    %203 = arith.addf %200, %202 : vector<16x256xf32>
    %c0_62 = arith.constant 0 : index
    %c0_63 = arith.constant 0 : index
    %204 = vector.load %arg12[%c0_62, %c0_63] : memref<16x256xf32, #tpu.memory_space<vmem>>, vector<16x256xf32>
    tpu.vector_store %arg12[%c0_62, %c0_63], %203 {strides = array<i32>} : memref<16x256xf32, #tpu.memory_space<vmem>>, vector<16x256xf32>,
    return
  }
}

</mosaic_0001>

<llo_original>
// kernel: language_model_forward.1
$region0: #{language_model_forward.1}
  #allocation0 [shape = 'u32[]', space=smem, size = 0x4, offset = 0x4, fixed_abs, tag = 'smem constant byte address 0x4 - core index']
  #allocation1 [shape = 'u32[72,128]{1,0:T(1,128)}', space=vmem, size = 0x9000, scoped, tag = 'internal scratch']
  %s0 = inlined_call_operand.vmem [shape: f32[16,512], index: 0, kind: input, shape index: {}]
  %s1 = inlined_call_operand.hbm [shape: f32[512,512], index: 1, kind: input, shape index: {}]
  %s2 = inlined_call_operand.vmem [shape: f32[128,512], index: 2, kind: input, shape index: {}]
  %s3 = inlined_call_operand.vmem [shape: f32[1,512], index: 3, kind: input, shape index: {}]
  %s4 = inlined_call_operand.hbm [shape: f32[128,512], index: 4, kind: input, shape index: {}]
  %s5 = inlined_call_operand.hbm [shape: f32[128,512], index: 5, kind: input, shape index: {}]
  %s6 = inlined_call_operand.vmem [shape: f32[1,512], index: 6, kind: input, shape index: {}]
  %s7 = inlined_call_operand.hbm [shape: f32[128,512], index: 7, kind: input, shape index: {}]
  %s8 = inlined_call_operand.hbm [shape: f32[128,512], index: 8, kind: input, shape index: {}]
  %s9 = inlined_call_operand.vmem [shape: f32[1,512], index: 9, kind: input, shape index: {}]
  %s10 = inlined_call_operand.hbm [shape: f32[128,256], index: 10, kind: input, shape index: {}]
  %s11 = inlined_call_operand.vmem [shape: f32[1,256], index: 11, kind: input, shape index: {}]
  %s12 = inlined_call_operand.vmem [shape: f32[16,256], index: 12, kind: output, shape index: {}]
  %s13 = sld [smem:[#allocation0]]
  $region82: #{language_model_forward.1} parent=0
    _
  %s15 = ssub.s32 1, %s13
  %s16 = scalar_select 0, %s15, %s13
  $region1: #{language_model_forward.1} parent=0
    #allocation2 [shape = 'u8[1048576]{0}', space=vmem, size = 0x100000, scoped, tag = 'input window, operand 1, single buffered']
    #allocation3 [shape = 's32[1]{0}', space=sflag, size = 0x4, scoped, tag = 'scoped memory for language_model_forward.1']
    #allocation4 [shape = 'u8[262144]{0}', space=vmem, size = 0x40000, scoped, tag = 'input window, operand 4, single buffered']
    #allocation5 [shape = 's32[1]{0}', space=sflag, size = 0x4, scoped, tag = 'scoped memory for language_model_forward.1']
    #allocation6 [shape = 'u8[262144]{0}', space=vmem, size = 0x40000, scoped, tag = 'input window, operand 5, single buffered']
    #allocation7 [shape = 'u8[262144]{0}', space=vmem, size = 0x40000, scoped, tag = 'input window, operand 7, single buffered']
    #allocation8 [shape = 's32[1]{0}', space=sflag, size = 0x4, scoped, tag = 'scoped memory for language_model_forward.1']
    #allocation9 [shape = 'u8[262144]{0}', space=vmem, size = 0x40000, scoped, tag = 'input window, operand 8, single buffered']
    #allocation10 [shape = 'u8[131072]{0}', space=vmem, size = 0x20000, scoped, tag = 'input window, operand 10, single buffered']
    #allocation11 [shape = 's32[1]{0}', space=sflag, size = 0x4, scoped, tag = 'scoped memory for language_model_forward.1']
    %17 = vsyncpa [#allocation3], 0
    %18 = vsyncpa [#allocation5], 0
    %19 = vsyncpa [#allocation8], 0
    %20 = vsyncpa [#allocation11], 0
    // Predicated region
    $region2: #{language_model_forward.1} parent=1 // pred_check
      _
    $region3: #{language_model_forward.1} parent=1 // pred_check_branch
      %22 = sbr.rel (0) target = $region5
    $region4: #{language_model_forward.1} parent=1 // pred_region
      _
    $region5: #{language_model_forward.1} parent=1 // pred_fallthru
      _
    // Predicated region
    $region6: #{language_model_forward.1} parent=1 // pred_check
      _
    $region7: #{language_model_forward.1} parent=1 // pred_check_branch
      %24 = sbr.rel (0) target = $region9
    $region8: #{language_model_forward.1} parent=1 // pred_region
      %26 = vsyncadd [#allocation3], 0
      %s27 = sshll.u32 %s1, 4
      %s28 = int_to_ptr.hbm [resolvable:$true] %s27
      %s29 = sshll.u32 [#allocation2], 4
      %s30 = int_to_ptr.vmem [resolvable:$true] %s29
      %35 = dma.hbm_to_vmem [thread:$0]  %s28, 32768, %s30, [#allocation3], 512, 512, 32
    $region9: #{language_model_forward.1} parent=1 // pred_fallthru
      _
    // Predicated region
    $region10: #{language_model_forward.1} parent=1 // pred_check
      _
    $region11: #{language_model_forward.1} parent=1 // pred_check_branch
      %37 = sbr.rel (0) target = $region13
    $region12: #{language_model_forward.1} parent=1 // pred_region
      _
    $region13: #{language_model_forward.1} parent=1 // pred_fallthru
      _
    // Predicated region
    $region14: #{language_model_forward.1} parent=1 // pred_check
      _
    $region15: #{language_model_forward.1} parent=1 // pred_check_branch
      %39 = sbr.rel (0) target = $region17
    $region16: #{language_model_forward.1} parent=1 // pred_region
      _
    $region17: #{language_model_forward.1} parent=1 // pred_fallthru
      _
    // Predicated region
    $region18: #{language_model_forward.1} parent=1 // pred_check
      _
    $region19: #{language_model_forward.1} parent=1 // pred_check_branch
      %41 = sbr.rel (0) target = $region21
    $region20: #{language_model_forward.1} parent=1 // pred_region
      %43 = vsyncadd [#allocation5], 0
      %s44 = sshll.u32 %s4, 4
      %s45 = int_to_ptr.hbm [resolvable:$true] %s44
      %s46 = sshll.u32 [#allocation4], 4
      %s47 = int_to_ptr.vmem [resolvable:$true] %s46
      %52 = dma.hbm_to_vmem [thread:$0]  %s45, 8192, %s47, [#allocation5], 512, 512, 32
    $region21: #{language_model_forward.1} parent=1 // pred_fallthru
      _
    // Predicated region
    $region22: #{language_model_forward.1} parent=1 // pred_check
      _
    $region23: #{language_model_forward.1} parent=1 // pred_check_branch
      %54 = sbr.rel (0) target = $region25
    $region24: #{language_model_forward.1} parent=1 // pred_region
      %56 = vsyncadd [#allocation5], 0
      %s57 = sshll.u32 %s5, 4
      %s58 = int_to_ptr.hbm [resolvable:$true] %s57
      %s59 = sshll.u32 [#allocation6], 4
      %s60 = int_to_ptr.vmem [resolvable:$true] %s59
      %65 = dma.hbm_to_vmem [thread:$0]  %s58, 8192, %s60, [#allocation5], 512, 512, 32
    $region25: #{language_model_forward.1} parent=1 // pred_fallthru
      _
    // Predicated region
    $region26: #{language_model_forward.1} parent=1 // pred_check
      _
    $region27: #{language_model_forward.1} parent=1 // pred_check_branch
      %67 = sbr.rel (0) target = $region29
    $region28: #{language_model_forward.1} parent=1 // pred_region
      _
    $region29: #{language_model_forward.1} parent=1 // pred_fallthru
      _
    // Predicated region
    $region30: #{language_model_forward.1} parent=1 // pred_check
      _
    $region31: #{language_model_forward.1} parent=1 // pred_check_branch
      %69 = sbr.rel (0) target = $region33
    $region32: #{language_model_forward.1} parent=1 // pred_region
      %71 = vsyncadd [#allocation8], 0
      %s72 = sshll.u32 %s7, 4
      %s73 = int_to_ptr.hbm [resolvable:$true] %s72
      %s74 = sshll.u32 [#allocation7], 4
      %s75 = int_to_ptr.vmem [resolvable:$true] %s74
      %80 = dma.hbm_to_vmem [thread:$0]  %s73, 8192, %s75, [#allocation8], 512, 512, 32
    $region33: #{language_model_forward.1} parent=1 // pred_fallthru
      _
    // Predicated region
    $region34: #{language_model_forward.1} parent=1 // pred_check
      _
    $region35: #{language_model_forward.1} parent=1 // pred_check_branch
      %82 = sbr.rel (0) target = $region37
    $region36: #{language_model_forward.1} parent=1 // pred_region
      %84 = vsyncadd [#allocation8], 0
      %s85 = sshll.u32 %s8, 4
      %s86 = int_to_ptr.hbm [resolvable:$true] %s85
      %s87 = sshll.u32 [#allocation9], 4
      %s88 = int_to_ptr.vmem [resolvable:$true] %s87
      %93 = dma.hbm_to_vmem [thread:$0]  %s86, 8192, %s88, [#allocation8], 512, 512, 32
    $region37: #{language_model_forward.1} parent=1 // pred_fallthru
      _
    // Predicated region
    $region38: #{language_model_forward.1} parent=1 // pred_check
      _
    $region39: #{language_model_forward.1} parent=1 // pred_check_branch
      %95 = sbr.rel (0) target = $region41
    $region40: #{language_model_forward.1} parent=1 // pred_region
      _
    $region41: #{language_model_forward.1} parent=1 // pred_fallthru
      _
    // Predicated region
    $region42: #{language_model_forward.1} parent=1 // pred_check
      _
    $region43: #{language_model_forward.1} parent=1 // pred_check_branch
      %97 = sbr.rel (0) target = $region45
    $region44: #{language_model_forward.1} parent=1 // pred_region
      %99 = vsyncadd [#allocation11], 0
      %s100 = sshll.u32 %s10, 4
      %s101 = int_to_ptr.hbm [resolvable:$true] %s100
      %s102 = sshll.u32 [#allocation10], 4
      %s103 = int_to_ptr.vmem [resolvable:$true] %s102
      %108 = dma.hbm_to_vmem [thread:$0]  %s101, 4096, %s103, [#allocation11], 256, 256, 16
    $region45: #{language_model_forward.1} parent=1 // pred_fallthru
      _
    // Predicated region
    $region46: #{language_model_forward.1} parent=1 // pred_check
      _
    $region47: #{language_model_forward.1} parent=1 // pred_check_branch
      %110 = sbr.rel (0) target = $region49
    $region48: #{language_model_forward.1} parent=1 // pred_region
      _
    $region49: #{language_model_forward.1} parent=1 // pred_fallthru
      _
    // Predicated region
    $region50: #{language_model_forward.1} parent=1 // pred_check
      _
    $region51: #{language_model_forward.1} parent=1 // pred_check_branch
      %112 = sbr.rel (0) target = $region53
    $region52: #{language_model_forward.1} parent=1 // pred_region
      %114 = dma.done [#allocation3], 32768
    $region53: #{language_model_forward.1} parent=1 // pred_fallthru
      _
    // Predicated region
    $region54: #{language_model_forward.1} parent=1 // pred_check
      _
    $region55: #{language_model_forward.1} parent=1 // pred_check_branch
      %116 = sbr.rel (0) target = $region57
    $region56: #{language_model_forward.1} parent=1 // pred_region
      %118 = dma.done [#allocation5], 8192
    $region57: #{language_model_forward.1} parent=1 // pred_fallthru
      _
    // Predicated region
    $region58: #{language_model_forward.1} parent=1 // pred_check
      _
    $region59: #{language_model_forward.1} parent=1 // pred_check_branch
      %120 = sbr.rel (0) target = $region61
    $region60: #{language_model_forward.1} parent=1 // pred_region
      %122 = dma.done [#allocation5], 8192
    $region61: #{language_model_forward.1} parent=1 // pred_fallthru
      _
    // Predicated region
    $region62: #{language_model_forward.1} parent=1 // pred_check
      _
    $region63: #{language_model_forward.1} parent=1 // pred_check_branch
      %124 = sbr.rel (0) target = $region65
    $region64: #{language_model_forward.1} parent=1 // pred_region
      %126 = dma.done [#allocation8], 8192
    $region65: #{language_model_forward.1} parent=1 // pred_fallthru
      _
    // Predicated region
    $region66: #{language_model_forward.1} parent=1 // pred_check
      _
    $region67: #{language_model_forward.1} parent=1 // pred_check_branch
      %128 = sbr.rel (0) target = $region69
    $region68: #{language_model_forward.1} parent=1 // pred_region
      %130 = dma.done [#allocation8], 8192
    $region69: #{language_model_forward.1} parent=1 // pred_fallthru
      _
    // Predicated region
    $region70: #{language_model_forward.1} parent=1 // pred_check
      _
    $region71: #{language_model_forward.1} parent=1 // pred_check_branch
      %132 = sbr.rel (0) target = $region73
    $region72: #{language_model_forward.1} parent=1 // pred_region
      %134 = dma.done [#allocation11], 4096
    $region73: #{language_model_forward.1} parent=1 // pred_fallthru
      _
    %v135 = vld [vmem:[%s0] sm:$0xff]
    %v136 = vld [vmem:[%s0 + $0x8] sm:$0xff]
    %v137 = vld [vmem:[%s0 + $0x10] sm:$0xff]
    %v138 = vld [vmem:[%s0 + $0x18] sm:$0xff]
    %v139 = vld [vmem:[%s0 + $0x20] sm:$0xff]
    %v140 = vld [vmem:[%s0 + $0x28] sm:$0xff]
    %v141 = vld [vmem:[%s0 + $0x30] sm:$0xff]
    %v142 = vld [vmem:[%s0 + $0x38] sm:$0xff]
    %v143 = vld [vmem:[#allocation2] sm:$0xff]
    %v144 = vld [vmem:[#allocation2 + $0x8] sm:$0xff]
    %v145 = vld [vmem:[#allocation2 + $0x10] sm:$0xff]
    %v146 = vld [vmem:[#allocation2 + $0x18] sm:$0xff]
    %v147 = vld [vmem:[#allocation2 + $0x20] sm:$0xff]
    %v148 = vld [vmem:[#allocation2 + $0x28] sm:$0xff]
    %v149 = vld [vmem:[#allocation2 + $0x30] sm:$0xff]
    %v150 = vld [vmem:[#allocation2 + $0x38] sm:$0xff]
    %v151 = vld [vmem:[#allocation2 + $0x40] sm:$0xff]
    %v152 = vld [vmem:[#allocation2 + $0x48] sm:$0xff]
    %v153 = vld [vmem:[#allocation2 + $0x50] sm:$0xff]
    %v154 = vld [vmem:[#allocation2 + $0x58] sm:$0xff]
    %v155 = vld [vmem:[#allocation2 + $0x60] sm:$0xff]
    %v156 = vld [vmem:[#allocation2 + $0x68] sm:$0xff]
    %v157 = vld [vmem:[#allocation2 + $0x70] sm:$0xff]
    %v158 = vld [vmem:[#allocation2 + $0x78] sm:$0xff]
    %v159 = vld [vmem:[#allocation2 + $0x80] sm:$0xff]
    %v160 = vld [vmem:[#allocation2 + $0x88] sm:$0xff]
    %v161 = vld [vmem:[#allocation2 + $0x90] sm:$0xff]
    %v162 = vld [vmem:[#allocation2 + $0x98] sm:$0xff]
    %v163 = vld [vmem:[#allocation2 + $0xa0] sm:$0xff]
    %v164 = vld [vmem:[#allocation2 + $0xa8] sm:$0xff]
    %v165 = vld [vmem:[#allocation2 + $0xb0] sm:$0xff]
    %v166 = vld [vmem:[#allocation2 + $0xb8] sm:$0xff]
    %v167 = vld [vmem:[#allocation2 + $0xc0] sm:$0xff]
    %v168 = vld [vmem:[#allocation2 + $0xc8] sm:$0xff]
    %v169 = vld [vmem:[#allocation2 + $0xd0] sm:$0xff]
    %v170 = vld [vmem:[#allocation2 + $0xd8] sm:$0xff]
    %v171 = vld [vmem:[#allocation2 + $0xe0] sm:$0xff]
    %v172 = vld [vmem:[#allocation2 + $0xe8] sm:$0xff]
    %v173 = vld [vmem:[#allocation2 + $0xf0] sm:$0xff]
    %v174 = vld [vmem:[#allocation2 + $0xf8] sm:$0xff]
    %v175 = vld [vmem:[#allocation2 + $0x100] sm:$0xff]
    %v176 = vld [vmem:[#allocation2 + $0x108] sm:$0xff]
    %v177 = vld [vmem:[#allocation2 + $0x110] sm:$0xff]
    %v178 = vld [vmem:[#allocation2 + $0x118] sm:$0xff]
    %v179 = vld [vmem:[#allocation2 + $0x120] sm:$0xff]
    %v180 = vld [vmem:[#allocation2 + $0x128] sm:$0xff]
    %v181 = vld [vmem:[#allocation2 + $0x130] sm:$0xff]
    %v182 = vld [vmem:[#allocation2 + $0x138] sm:$0xff]
    %v183 = vld [vmem:[#allocation2 + $0x140] sm:$0xff]
    %v184 = vld [vmem:[#allocation2 + $0x148] sm:$0xff]
    %v185 = vld [vmem:[#allocation2 + $0x150] sm:$0xff]
    %v186 = vld [vmem:[#allocation2 + $0x158] sm:$0xff]
    %v187 = vld [vmem:[#allocation2 + $0x160] sm:$0xff]
    %v188 = vld [vmem:[#allocation2 + $0x168] sm:$0xff]
    %v189 = vld [vmem:[#allocation2 + $0x170] sm:$0xff]
    %v190 = vld [vmem:[#allocation2 + $0x178] sm:$0xff]
    %v191 = vld [vmem:[#allocation2 + $0x180] sm:$0xff]
    %v192 = vld [vmem:[#allocation2 + $0x188] sm:$0xff]
    %v193 = vld [vmem:[#allocation2 + $0x190] sm:$0xff]
    %v194 = vld [vmem:[#allocation2 + $0x198] sm:$0xff]
    %v195 = vld [vmem:[#allocation2 + $0x1a0] sm:$0xff]
    %v196 = vld [vmem:[#allocation2 + $0x1a8] sm:$0xff]
    %v197 = vld [vmem:[#allocation2 + $0x1b0] sm:$0xff]
    %v198 = vld [vmem:[#allocation2 + $0x1b8] sm:$0xff]
    %v199 = vld [vmem:[#allocation2 + $0x1c0] sm:$0xff]
    %v200 = vld [vmem:[#allocation2 + $0x1c8] sm:$0xff]
    %v201 = vld [vmem:[#allocation2 + $0x1d0] sm:$0xff]
    %v202 = vld [vmem:[#allocation2 + $0x1d8] sm:$0xff]
    %v203 = vld [vmem:[#allocation2 + $0x1e0] sm:$0xff]
    %v204 = vld [vmem:[#allocation2 + $0x1e8] sm:$0xff]
    %v205 = vld [vmem:[#allocation2 + $0x1f0] sm:$0xff]
    %v206 = vld [vmem:[#allocation2 + $0x1f8] sm:$0xff]
    %v207 = vld [vmem:[#allocation2 + $0x200] sm:$0xff]
    %v208 = vld [vmem:[#allocation2 + $0x208] sm:$0xff]
    %v209 = vld [vmem:[#allocation2 + $0x210] sm:$0xff]
    %v210 = vld [vmem:[#allocation2 + $0x218] sm:$0xff]
    %v211 = vld [vmem:[#allocation2 + $0x220] sm:$0xff]
    %v212 = vld [vmem:[#allocation2 + $0x228] sm:$0xff]
    %v213 = vld [vmem:[#allocation2 + $0x230] sm:$0xff]
    %v214 = vld [vmem:[#allocation2 + $0x238] sm:$0xff]
    %v215 = vld [vmem:[#allocation2 + $0x240] sm:$0xff]
    %v216 = vld [vmem:[#allocation2 + $0x248] sm:$0xff]
    %v217 = vld [vmem:[#allocation2 + $0x250] sm:$0xff]
    %v218 = vld [vmem:[#allocation2 + $0x258] sm:$0xff]
    %v219 = vld [vmem:[#allocation2 + $0x260] sm:$0xff]
    %v220 = vld [vmem:[#allocation2 + $0x268] sm:$0xff]
    %v221 = vld [vmem:[#allocation2 + $0x270] sm:$0xff]
    %v222 = vld [vmem:[#allocation2 + $0x278] sm:$0xff]
    %v223 = vld [vmem:[#allocation2 + $0x280] sm:$0xff]
    %v224 = vld [vmem:[#allocation2 + $0x288] sm:$0xff]
    %v225 = vld [vmem:[#allocation2 + $0x290] sm:$0xff]
    %v226 = vld [vmem:[#allocation2 + $0x298] sm:$0xff]
    %v227 = vld [vmem:[#allocation2 + $0x2a0] sm:$0xff]
    %v228 = vld [vmem:[#allocation2 + $0x2a8] sm:$0xff]
    %v229 = vld [vmem:[#allocation2 + $0x2b0] sm:$0xff]
    %v230 = vld [vmem:[#allocation2 + $0x2b8] sm:$0xff]
    %v231 = vld [vmem:[#allocation2 + $0x2c0] sm:$0xff]
    %v232 = vld [vmem:[#allocation2 + $0x2c8] sm:$0xff]
    %v233 = vld [vmem:[#allocation2 + $0x2d0] sm:$0xff]
    %v234 = vld [vmem:[#allocation2 + $0x2d8] sm:$0xff]
    %v235 = vld [vmem:[#allocation2 + $0x2e0] sm:$0xff]
    %v236 = vld [vmem:[#allocation2 + $0x2e8] sm:$0xff]
    %v237 = vld [vmem:[#allocation2 + $0x2f0] sm:$0xff]
    %v238 = vld [vmem:[#allocation2 + $0x2f8] sm:$0xff]
    %v239 = vld [vmem:[#allocation2 + $0x300] sm:$0xff]
    %v240 = vld [vmem:[#allocation2 + $0x308] sm:$0xff]
    %v241 = vld [vmem:[#allocation2 + $0x310] sm:$0xff]
    %v242 = vld [vmem:[#allocation2 + $0x318] sm:$0xff]
    %v243 = vld [vmem:[#allocation2 + $0x320] sm:$0xff]
    %v244 = vld [vmem:[#allocation2 + $0x328] sm:$0xff]
    %v245 = vld [vmem:[#allocation2 + $0x330] sm:$0xff]
    %v246 = vld [vmem:[#allocation2 + $0x338] sm:$0xff]
    %v247 = vld [vmem:[#allocation2 + $0x340] sm:$0xff]
    %v248 = vld [vmem:[#allocation2 + $0x348] sm:$0xff]
    %v249 = vld [vmem:[#allocation2 + $0x350] sm:$0xff]
    %v250 = vld [vmem:[#allocation2 + $0x358] sm:$0xff]
    %v251 = vld [vmem:[#allocation2 + $0x360] sm:$0xff]
    %v252 = vld [vmem:[#allocation2 + $0x368] sm:$0xff]
    %v253 = vld [vmem:[#allocation2 + $0x370] sm:$0xff]
    %v254 = vld [vmem:[#allocation2 + $0x378] sm:$0xff]
    %v255 = vld [vmem:[#allocation2 + $0x380] sm:$0xff]
    %v256 = vld [vmem:[#allocation2 + $0x388] sm:$0xff]
    %v257 = vld [vmem:[#allocation2 + $0x390] sm:$0xff]
    %v258 = vld [vmem:[#allocation2 + $0x398] sm:$0xff]
    %v259 = vld [vmem:[#allocation2 + $0x3a0] sm:$0xff]
    %v260 = vld [vmem:[#allocation2 + $0x3a8] sm:$0xff]
    %v261 = vld [vmem:[#allocation2 + $0x3b0] sm:$0xff]
    %v262 = vld [vmem:[#allocation2 + $0x3b8] sm:$0xff]
    %v263 = vld [vmem:[#allocation2 + $0x3c0] sm:$0xff]
    %v264 = vld [vmem:[#allocation2 + $0x3c8] sm:$0xff]
    %v265 = vld [vmem:[#allocation2 + $0x3d0] sm:$0xff]
    %v266 = vld [vmem:[#allocation2 + $0x3d8] sm:$0xff]
    %v267 = vld [vmem:[#allocation2 + $0x3e0] sm:$0xff]
    %v268 = vld [vmem:[#allocation2 + $0x3e8] sm:$0xff]
    %v269 = vld [vmem:[#allocation2 + $0x3f0] sm:$0xff]
    %v270 = vld [vmem:[#allocation2 + $0x3f8] sm:$0xff]
    %v271 = vld [vmem:[#allocation2 + $0x400] sm:$0xff]
    %v272 = vld [vmem:[#allocation2 + $0x408] sm:$0xff]
    %v273 = vld [vmem:[#allocation2 + $0x410] sm:$0xff]
    %v274 = vld [vmem:[#allocation2 + $0x418] sm:$0xff]
    %v275 = vld [vmem:[#allocation2 + $0x420] sm:$0xff]
    %v276 = vld [vmem:[#allocation2 + $0x428] sm:$0xff]
    %v277 = vld [vmem:[#allocation2 + $0x430] sm:$0xff]
    %v278 = vld [vmem:[#allocation2 + $0x438] sm:$0xff]
    %v279 = vld [vmem:[#allocation2 + $0x440] sm:$0xff]
    %v280 = vld [vmem:[#allocation2 + $0x448] sm:$0xff]
    %v281 = vld [vmem:[#allocation2 + $0x450] sm:$0xff]
    %v282 = vld [vmem:[#allocation2 + $0x458] sm:$0xff]
    %v283 = vld [vmem:[#allocation2 + $0x460] sm:$0xff]
    %v284 = vld [vmem:[#allocation2 + $0x468] sm:$0xff]
    %v285 = vld [vmem:[#allocation2 + $0x470] sm:$0xff]
    %v286 = vld [vmem:[#allocation2 + $0x478] sm:$0xff]
    %v287 = vld [vmem:[#allocation2 + $0x480] sm:$0xff]
    %v288 = vld [vmem:[#allocation2 + $0x488] sm:$0xff]
    %v289 = vld [vmem:[#allocation2 + $0x490] sm:$0xff]
    %v290 = vld [vmem:[#allocation2 + $0x498] sm:$0xff]
    %v291 = vld [vmem:[#allocation2 + $0x4a0] sm:$0xff]
    %v292 = vld [vmem:[#allocation2 + $0x4a8] sm:$0xff]
    %v293 = vld [vmem:[#allocation2 + $0x4b0] sm:$0xff]
    %v294 = vld [vmem:[#allocation2 + $0x4b8] sm:$0xff]
    %v295 = vld [vmem:[#allocation2 + $0x4c0] sm:$0xff]
    %v296 = vld [vmem:[#allocation2 + $0x4c8] sm:$0xff]
    %v297 = vld [vmem:[#allocation2 + $0x4d0] sm:$0xff]
    %v298 = vld [vmem:[#allocation2 + $0x4d8] sm:$0xff]
    %v299 = vld [vmem:[#allocation2 + $0x4e0] sm:$0xff]
    %v300 = vld [vmem:[#allocation2 + $0x4e8] sm:$0xff]
    %v301 = vld [vmem:[#allocation2 + $0x4f0] sm:$0xff]
    %v302 = vld [vmem:[#allocation2 + $0x4f8] sm:$0xff]
    %v303 = vld [vmem:[#allocation2 + $0x500] sm:$0xff]
    %v304 = vld [vmem:[#allocation2 + $0x508] sm:$0xff]
    %v305 = vld [vmem:[#allocation2 + $0x510] sm:$0xff]
    %v306 = vld [vmem:[#allocation2 + $0x518] sm:$0xff]
    %v307 = vld [vmem:[#allocation2 + $0x520] sm:$0xff]
    %v308 = vld [vmem:[#allocation2 + $0x528] sm:$0xff]
    %v309 = vld [vmem:[#allocation2 + $0x530] sm:$0xff]
    %v310 = vld [vmem:[#allocation2 + $0x538] sm:$0xff]
    %v311 = vld [vmem:[#allocation2 + $0x540] sm:$0xff]
    %v312 = vld [vmem:[#allocation2 + $0x548] sm:$0xff]
    %v313 = vld [vmem:[#allocation2 + $0x550] sm:$0xff]
    %v314 = vld [vmem:[#allocation2 + $0x558] sm:$0xff]
    %v315 = vld [vmem:[#allocation2 + $0x560] sm:$0xff]
    %v316 = vld [vmem:[#allocation2 + $0x568] sm:$0xff]
    %v317 = vld [vmem:[#allocation2 + $0x570] sm:$0xff]
    %v318 = vld [vmem:[#allocation2 + $0x578] sm:$0xff]
    %v319 = vld [vmem:[#allocation2 + $0x580] sm:$0xff]
    %v320 = vld [vmem:[#allocation2 + $0x588] sm:$0xff]
    %v321 = vld [vmem:[#allocation2 + $0x590] sm:$0xff]
    %v322 = vld [vmem:[#allocation2 + $0x598] sm:$0xff]
    %v323 = vld [vmem:[#allocation2 + $0x5a0] sm:$0xff]
    %v324 = vld [vmem:[#allocation2 + $0x5a8] sm:$0xff]
    %v325 = vld [vmem:[#allocation2 + $0x5b0] sm:$0xff]
    %v326 = vld [vmem:[#allocation2 + $0x5b8] sm:$0xff]
    %v327 = vld [vmem:[#allocation2 + $0x5c0] sm:$0xff]
    %v328 = vld [vmem:[#allocation2 + $0x5c8] sm:$0xff]
    %v329 = vld [vmem:[#allocation2 + $0x5d0] sm:$0xff]
    %v330 = vld [vmem:[#allocation2 + $0x5d8] sm:$0xff]
    %v331 = vld [vmem:[#allocation2 + $0x5e0] sm:$0xff]
    %v332 = vld [vmem:[#allocation2 + $0x5e8] sm:$0xff]
    %v333 = vld [vmem:[#allocation2 + $0x5f0] sm:$0xff]
    %v334 = vld [vmem:[#allocation2 + $0x5f8] sm:$0xff]
    %v335 = vld [vmem:[#allocation2 + $0x600] sm:$0xff]
    %v336 = vld [vmem:[#allocation2 + $0x608] sm:$0xff]
    %v337 = vld [vmem:[#allocation2 + $0x610] sm:$0xff]
    %v338 = vld [vmem:[#allocation2 + $0x618] sm:$0xff]
    %v339 = vld [vmem:[#allocation2 + $0x620] sm:$0xff]
    %v340 = vld [vmem:[#allocation2 + $0x628] sm:$0xff]
    %v341 = vld [vmem:[#allocation2 + $0x630] sm:$0xff]
    %v342 = vld [vmem:[#allocation2 + $0x638] sm:$0xff]
    %v343 = vld [vmem:[#allocation2 + $0x640] sm:$0xff]
    %v344 = vld [vmem:[#allocation2 + $0x648] sm:$0xff]
    %v345 = vld [vmem:[#allocation2 + $0x650] sm:$0xff]
    %v346 = vld [vmem:[#allocation2 + $0x658] sm:$0xff]
    %v347 = vld [vmem:[#allocation2 + $0x660] sm:$0xff]
    %v348 = vld [vmem:[#allocation2 + $0x668] sm:$0xff]
    %v349 = vld [vmem:[#allocation2 + $0x670] sm:$0xff]
    %v350 = vld [vmem:[#allocation2 + $0x678] sm:$0xff]
    %v351 = vld [vmem:[#allocation2 + $0x680] sm:$0xff]
    %v352 = vld [vmem:[#allocation2 + $0x688] sm:$0xff]
    %v353 = vld [vmem:[#allocation2 + $0x690] sm:$0xff]
    %v354 = vld [vmem:[#allocation2 + $0x698] sm:$0xff]
    %v355 = vld [vmem:[#allocation2 + $0x6a0] sm:$0xff]
    %v356 = vld [vmem:[#allocation2 + $0x6a8] sm:$0xff]
    %v357 = vld [vmem:[#allocation2 + $0x6b0] sm:$0xff]
    %v358 = vld [vmem:[#allocation2 + $0x6b8] sm:$0xff]
    %v359 = vld [vmem:[#allocation2 + $0x6c0] sm:$0xff]
    %v360 = vld [vmem:[#allocation2 + $0x6c8] sm:$0xff]
    %v361 = vld [vmem:[#allocation2 + $0x6d0] sm:$0xff]
    %v362 = vld [vmem:[#allocation2 + $0x6d8] sm:$0xff]
    %v363 = vld [vmem:[#allocation2 + $0x6e0] sm:$0xff]
    %v364 = vld [vmem:[#allocation2 + $0x6e8] sm:$0xff]
    %v365 = vld [vmem:[#allocation2 + $0x6f0] sm:$0xff]
    %v366 = vld [vmem:[#allocation2 + $0x6f8] sm:$0xff]
    %v367 = vld [vmem:[#allocation2 + $0x700] sm:$0xff]
    %v368 = vld [vmem:[#allocation2 + $0x708] sm:$0xff]
    %v369 = vld [vmem:[#allocation2 + $0x710] sm:$0xff]
    %v370 = vld [vmem:[#allocation2 + $0x718] sm:$0xff]
    %v371 = vld [vmem:[#allocation2 + $0x720] sm:$0xff]
    %v372 = vld [vmem:[#allocation2 + $0x728] sm:$0xff]
    %v373 = vld [vmem:[#allocation2 + $0x730] sm:$0xff]
    %v374 = vld [vmem:[#allocation2 + $0x738] sm:$0xff]
    %v375 = vld [vmem:[#allocation2 + $0x740] sm:$0xff]
    %v376 = vld [vmem:[#allocation2 + $0x748] sm:$0xff]
    %v377 = vld [vmem:[#allocation2 + $0x750] sm:$0xff]
    %v378 = vld [vmem:[#allocation2 + $0x758] sm:$0xff]
    %v379 = vld [vmem:[#allocation2 + $0x760] sm:$0xff]
    %v380 = vld [vmem:[#allocation2 + $0x768] sm:$0xff]
    %v381 = vld [vmem:[#allocation2 + $0x770] sm:$0xff]
    %v382 = vld [vmem:[#allocation2 + $0x778] sm:$0xff]
    %v383 = vld [vmem:[#allocation2 + $0x780] sm:$0xff]
    %v384 = vld [vmem:[#allocation2 + $0x788] sm:$0xff]
    %v385 = vld [vmem:[#allocation2 + $0x790] sm:$0xff]
    %v386 = vld [vmem:[#allocation2 + $0x798] sm:$0xff]
    %v387 = vld [vmem:[#allocation2 + $0x7a0] sm:$0xff]
    %v388 = vld [vmem:[#allocation2 + $0x7a8] sm:$0xff]
    %v389 = vld [vmem:[#allocation2 + $0x7b0] sm:$0xff]
    %v390 = vld [vmem:[#allocation2 + $0x7b8] sm:$0xff]
    %v391 = vld [vmem:[#allocation2 + $0x7c0] sm:$0xff]
    %v392 = vld [vmem:[#allocation2 + $0x7c8] sm:$0xff]
    %v393 = vld [vmem:[#allocation2 + $0x7d0] sm:$0xff]
    %v394 = vld [vmem:[#allocation2 + $0x7d8] sm:$0xff]
    %v395 = vld [vmem:[#allocation2 + $0x7e0] sm:$0xff]
    %v396 = vld [vmem:[#allocation2 + $0x7e8] sm:$0xff]
    %v397 = vld [vmem:[#allocation2 + $0x7f0] sm:$0xff]
    %v398 = vld [vmem:[#allocation2 + $0x7f8] sm:$0xff]
    %v399 = vld [vmem:[%s3] sm:$0xf]
    %v401 = vperm.slane %v399, 0
    %v402 = vperm.slane %v399, 1
    %v403 = vperm.slane %v399, 2
    %v404 = vperm.slane %v399, 3
    %409 = vmatpush.msra.mxu0 %v203
    %410 = vmatpush.msra.mxu0 %v199
    %411 = vmatpush.msra.mxu0 %v195
    %412 = vmatpush.msra.mxu0 %v191
    %413 = vmatpush.msra.mxu0 %v187
    %414 = vmatpush.msra.mxu0 %v183
    %415 = vmatpush.msra.mxu0 %v179
    %416 = vmatpush.msra.mxu0 %v175
    %417 = vmatpush.msra.mxu0 %v171
    %418 = vmatpush.msra.mxu0 %v167
    %419 = vmatpush.msra.mxu0 %v163
    %420 = vmatpush.msra.mxu0 %v159
    %421 = vmatpush.msra.mxu0 %v155
    %422 = vmatpush.msra.mxu0 %v151
    %423 = vmatpush.msra.mxu0 %v147
    %424 = vmatpush.msra.mxu0 %v143
    %425 = vmatmul.f32.gmra.mxu0 %v135
    %v426 = vpop.f32.mrf.mxu0
    %v427 = vadd.f32 %v401, %v426
    %428 = vmatmul.f32.gmra.mxu0 %v139
    %v429 = vpop.f32.mrf.mxu0
    %v430 = vadd.f32 %v401, %v429
    %431 = vdwg.mxu0
    %432 = vmatpush.msra.mxu0 %v267
    %433 = vmatpush.msra.mxu0 %v263
    %434 = vmatpush.msra.mxu0 %v259
    %435 = vmatpush.msra.mxu0 %v255
    %436 = vmatpush.msra.mxu0 %v251
    %437 = vmatpush.msra.mxu0 %v247
    %438 = vmatpush.msra.mxu0 %v243
    %439 = vmatpush.msra.mxu0 %v239
    %440 = vmatpush.msra.mxu0 %v235
    %441 = vmatpush.msra.mxu0 %v231
    %442 = vmatpush.msra.mxu0 %v227
    %443 = vmatpush.msra.mxu0 %v223
    %444 = vmatpush.msra.mxu0 %v219
    %445 = vmatpush.msra.mxu0 %v215
    %446 = vmatpush.msra.mxu0 %v211
    %447 = vmatpush.msra.mxu0 %v207
    %448 = vmatmul.f32.gmra.mxu0 %v136
    %v449 = vpop.f32.mrf.mxu0
    %v450 = vadd.f32 %v427, %v449
    %451 = vmatmul.f32.gmra.mxu0 %v140
    %v452 = vpop.f32.mrf.mxu0
    %v453 = vadd.f32 %v430, %v452
    %454 = vdwg.mxu0
    %455 = vmatpush.msra.mxu0 %v331
    %456 = vmatpush.msra.mxu0 %v327
    %457 = vmatpush.msra.mxu0 %v323
    %458 = vmatpush.msra.mxu0 %v319
    %459 = vmatpush.msra.mxu0 %v315
    %460 = vmatpush.msra.mxu0 %v311
    %461 = vmatpush.msra.mxu0 %v307
    %462 = vmatpush.msra.mxu0 %v303
    %463 = vmatpush.msra.mxu0 %v299
    %464 = vmatpush.msra.mxu0 %v295
    %465 = vmatpush.msra.mxu0 %v291
    %466 = vmatpush.msra.mxu0 %v287
    %467 = vmatpush.msra.mxu0 %v283
    %468 = vmatpush.msra.mxu0 %v279
    %469 = vmatpush.msra.mxu0 %v275
    %470 = vmatpush.msra.mxu0 %v271
    %471 = vmatmul.f32.gmra.mxu0 %v137
    %v472 = vpop.f32.mrf.mxu0
    %v473 = vadd.f32 %v450, %v472
    %474 = vmatmul.f32.gmra.mxu0 %v141
    %v475 = vpop.f32.mrf.mxu0
    %v476 = vadd.f32 %v453, %v475
    %477 = vdwg.mxu0
    %478 = vmatpush.msra.mxu0 %v395
    %479 = vmatpush.msra.mxu0 %v391
    %480 = vmatpush.msra.mxu0 %v387
    %481 = vmatpush.msra.mxu0 %v383
    %482 = vmatpush.msra.mxu0 %v379
    %483 = vmatpush.msra.mxu0 %v375
    %484 = vmatpush.msra.mxu0 %v371
    %485 = vmatpush.msra.mxu0 %v367
    %486 = vmatpush.msra.mxu0 %v363
    %487 = vmatpush.msra.mxu0 %v359
    %488 = vmatpush.msra.mxu0 %v355
    %489 = vmatpush.msra.mxu0 %v351
    %490 = vmatpush.msra.mxu0 %v347
    %491 = vmatpush.msra.mxu0 %v343
    %492 = vmatpush.msra.mxu0 %v339
    %493 = vmatpush.msra.mxu0 %v335
    %494 = vmatmul.f32.gmra.mxu0 %v138
    %v495 = vpop.f32.mrf.mxu0
    %v496 = vadd.f32 %v473, %v495
    %497 = vmatmul.f32.gmra.mxu0 %v142
    %v498 = vpop.f32.mrf.mxu0
    %v499 = vadd.f32 %v476, %v498
    %500 = vdwg.mxu0
    %501 = vmatpush.msra.mxu0 %v204
    %502 = vmatpush.msra.mxu0 %v200
    %503 = vmatpush.msra.mxu0 %v196
    %504 = vmatpush.msra.mxu0 %v192
    %505 = vmatpush.msra.mxu0 %v188
    %506 = vmatpush.msra.mxu0 %v184
    %507 = vmatpush.msra.mxu0 %v180
    %508 = vmatpush.msra.mxu0 %v176
    %509 = vmatpush.msra.mxu0 %v172
    %510 = vmatpush.msra.mxu0 %v168
    %511 = vmatpush.msra.mxu0 %v164
    %512 = vmatpush.msra.mxu0 %v160
    %513 = vmatpush.msra.mxu0 %v156
    %514 = vmatpush.msra.mxu0 %v152
    %515 = vmatpush.msra.mxu0 %v148
    %516 = vmatpush.msra.mxu0 %v144
    %517 = vmatmul.f32.gmra.mxu0 %v135
    %v518 = vpop.f32.mrf.mxu0
    %v519 = vadd.f32 %v402, %v518
    %520 = vmatmul.f32.gmra.mxu0 %v139
    %v521 = vpop.f32.mrf.mxu0
    %v522 = vadd.f32 %v402, %v521
    %523 = vdwg.mxu0
    %524 = vmatpush.msra.mxu0 %v268
    %525 = vmatpush.msra.mxu0 %v264
    %526 = vmatpush.msra.mxu0 %v260
    %527 = vmatpush.msra.mxu0 %v256
    %528 = vmatpush.msra.mxu0 %v252
    %529 = vmatpush.msra.mxu0 %v248
    %530 = vmatpush.msra.mxu0 %v244
    %531 = vmatpush.msra.mxu0 %v240
    %532 = vmatpush.msra.mxu0 %v236
    %533 = vmatpush.msra.mxu0 %v232
    %534 = vmatpush.msra.mxu0 %v228
    %535 = vmatpush.msra.mxu0 %v224
    %536 = vmatpush.msra.mxu0 %v220
    %537 = vmatpush.msra.mxu0 %v216
    %538 = vmatpush.msra.mxu0 %v212
    %539 = vmatpush.msra.mxu0 %v208
    %540 = vmatmul.f32.gmra.mxu0 %v136
    %v541 = vpop.f32.mrf.mxu0
    %v542 = vadd.f32 %v519, %v541
    %543 = vmatmul.f32.gmra.mxu0 %v140
    %v544 = vpop.f32.mrf.mxu0
    %v545 = vadd.f32 %v522, %v544
    %546 = vdwg.mxu0
    %547 = vmatpush.msra.mxu0 %v332
    %548 = vmatpush.msra.mxu0 %v328
    %549 = vmatpush.msra.mxu0 %v324
    %550 = vmatpush.msra.mxu0 %v320
    %551 = vmatpush.msra.mxu0 %v316
    %552 = vmatpush.msra.mxu0 %v312
    %553 = vmatpush.msra.mxu0 %v308
    %554 = vmatpush.msra.mxu0 %v304
    %555 = vmatpush.msra.mxu0 %v300
    %556 = vmatpush.msra.mxu0 %v296
    %557 = vmatpush.msra.mxu0 %v292
    %558 = vmatpush.msra.mxu0 %v288
    %559 = vmatpush.msra.mxu0 %v284
    %560 = vmatpush.msra.mxu0 %v280
    %561 = vmatpush.msra.mxu0 %v276
    %562 = vmatpush.msra.mxu0 %v272
    %563 = vmatmul.f32.gmra.mxu0 %v137
    %v564 = vpop.f32.mrf.mxu0
    %v565 = vadd.f32 %v542, %v564
    %566 = vmatmul.f32.gmra.mxu0 %v141
    %v567 = vpop.f32.mrf.mxu0
    %v568 = vadd.f32 %v545, %v567
    %569 = vdwg.mxu0
    %570 = vmatpush.msra.mxu0 %v396
    %571 = vmatpush.msra.mxu0 %v392
    %572 = vmatpush.msra.mxu0 %v388
    %573 = vmatpush.msra.mxu0 %v384
    %574 = vmatpush.msra.mxu0 %v380
    %575 = vmatpush.msra.mxu0 %v376
    %576 = vmatpush.msra.mxu0 %v372
    %577 = vmatpush.msra.mxu0 %v368
    %578 = vmatpush.msra.mxu0 %v364
    %579 = vmatpush.msra.mxu0 %v360
    %580 = vmatpush.msra.mxu0 %v356
    %581 = vmatpush.msra.mxu0 %v352
    %582 = vmatpush.msra.mxu0 %v348
    %583 = vmatpush.msra.mxu0 %v344
    %584 = vmatpush.msra.mxu0 %v340
    %585 = vmatpush.msra.mxu0 %v336
    %586 = vmatmul.f32.gmra.mxu0 %v138
    %v587 = vpop.f32.mrf.mxu0
    %v588 = vadd.f32 %v565, %v587
    %589 = vmatmul.f32.gmra.mxu0 %v142
    %v590 = vpop.f32.mrf.mxu0
    %v591 = vadd.f32 %v568, %v590
    %592 = vdwg.mxu0
    %593 = vmatpush.msra.mxu0 %v205
    %594 = vmatpush.msra.mxu0 %v201
    %595 = vmatpush.msra.mxu0 %v197
    %596 = vmatpush.msra.mxu0 %v193
    %597 = vmatpush.msra.mxu0 %v189
    %598 = vmatpush.msra.mxu0 %v185
    %599 = vmatpush.msra.mxu0 %v181
    %600 = vmatpush.msra.mxu0 %v177
    %601 = vmatpush.msra.mxu0 %v173
    %602 = vmatpush.msra.mxu0 %v169
    %603 = vmatpush.msra.mxu0 %v165
    %604 = vmatpush.msra.mxu0 %v161
    %605 = vmatpush.msra.mxu0 %v157
    %606 = vmatpush.msra.mxu0 %v153
    %607 = vmatpush.msra.mxu0 %v149
    %608 = vmatpush.msra.mxu0 %v145
    %609 = vmatmul.f32.gmra.mxu0 %v135
    %v610 = vpop.f32.mrf.mxu0
    %v611 = vadd.f32 %v403, %v610
    %612 = vmatmul.f32.gmra.mxu0 %v139
    %v613 = vpop.f32.mrf.mxu0
    %v614 = vadd.f32 %v403, %v613
    %615 = vdwg.mxu0
    %616 = vmatpush.msra.mxu0 %v269
    %617 = vmatpush.msra.mxu0 %v265
    %618 = vmatpush.msra.mxu0 %v261
    %619 = vmatpush.msra.mxu0 %v257
    %620 = vmatpush.msra.mxu0 %v253
    %621 = vmatpush.msra.mxu0 %v249
    %622 = vmatpush.msra.mxu0 %v245
    %623 = vmatpush.msra.mxu0 %v241
    %624 = vmatpush.msra.mxu0 %v237
    %625 = vmatpush.msra.mxu0 %v233
    %626 = vmatpush.msra.mxu0 %v229
    %627 = vmatpush.msra.mxu0 %v225
    %628 = vmatpush.msra.mxu0 %v221
    %629 = vmatpush.msra.mxu0 %v217
    %630 = vmatpush.msra.mxu0 %v213
    %631 = vmatpush.msra.mxu0 %v209
    %632 = vmatmul.f32.gmra.mxu0 %v136
    %v633 = vpop.f32.mrf.mxu0
    %v634 = vadd.f32 %v611, %v633
    %635 = vmatmul.f32.gmra.mxu0 %v140
    %v636 = vpop.f32.mrf.mxu0
    %v637 = vadd.f32 %v614, %v636
    %638 = vdwg.mxu0
    %639 = vmatpush.msra.mxu0 %v333
    %640 = vmatpush.msra.mxu0 %v329
    %641 = vmatpush.msra.mxu0 %v325
    %642 = vmatpush.msra.mxu0 %v321
    %643 = vmatpush.msra.mxu0 %v317
    %644 = vmatpush.msra.mxu0 %v313
    %645 = vmatpush.msra.mxu0 %v309
    %646 = vmatpush.msra.mxu0 %v305
    %647 = vmatpush.msra.mxu0 %v301
    %648 = vmatpush.msra.mxu0 %v297
    %649 = vmatpush.msra.mxu0 %v293
    %650 = vmatpush.msra.mxu0 %v289
    %651 = vmatpush.msra.mxu0 %v285
    %652 = vmatpush.msra.mxu0 %v281
    %653 = vmatpush.msra.mxu0 %v277
    %654 = vmatpush.msra.mxu0 %v273
    %655 = vmatmul.f32.gmra.mxu0 %v137
    %v656 = vpop.f32.mrf.mxu0
    %v657 = vadd.f32 %v634, %v656
    %658 = vmatmul.f32.gmra.mxu0 %v141
    %v659 = vpop.f32.mrf.mxu0
    %v660 = vadd.f32 %v637, %v659
    %661 = vdwg.mxu0
    %662 = vmatpush.msra.mxu0 %v397
    %663 = vmatpush.msra.mxu0 %v393
    %664 = vmatpush.msra.mxu0 %v389
    %665 = vmatpush.msra.mxu0 %v385
    %666 = vmatpush.msra.mxu0 %v381
    %667 = vmatpush.msra.mxu0 %v377
    %668 = vmatpush.msra.mxu0 %v373
    %669 = vmatpush.msra.mxu0 %v369
    %670 = vmatpush.msra.mxu0 %v365
    %671 = vmatpush.msra.mxu0 %v361
    %672 = vmatpush.msra.mxu0 %v357
    %673 = vmatpush.msra.mxu0 %v353
    %674 = vmatpush.msra.mxu0 %v349
    %675 = vmatpush.msra.mxu0 %v345
    %676 = vmatpush.msra.mxu0 %v341
    %677 = vmatpush.msra.mxu0 %v337
    %678 = vmatmul.f32.gmra.mxu0 %v138
    %v679 = vpop.f32.mrf.mxu0
    %v680 = vadd.f32 %v657, %v679
    %681 = vmatmul.f32.gmra.mxu0 %v142
    %v682 = vpop.f32.mrf.mxu0
    %v683 = vadd.f32 %v660, %v682
    %684 = vdwg.mxu0
    %685 = vmatpush.msra.mxu0 %v206
    %686 = vmatpush.msra.mxu0 %v202
    %687 = vmatpush.msra.mxu0 %v198
    %688 = vmatpush.msra.mxu0 %v194
    %689 = vmatpush.msra.mxu0 %v190
    %690 = vmatpush.msra.mxu0 %v186
    %691 = vmatpush.msra.mxu0 %v182
    %692 = vmatpush.msra.mxu0 %v178
    %693 = vmatpush.msra.mxu0 %v174
    %694 = vmatpush.msra.mxu0 %v170
    %695 = vmatpush.msra.mxu0 %v166
    %696 = vmatpush.msra.mxu0 %v162
    %697 = vmatpush.msra.mxu0 %v158
    %698 = vmatpush.msra.mxu0 %v154
    %699 = vmatpush.msra.mxu0 %v150
    %700 = vmatpush.msra.mxu0 %v146
    %701 = vmatmul.f32.gmra.mxu0 %v135
    %v702 = vpop.f32.mrf.mxu0
    %v703 = vadd.f32 %v404, %v702
    %704 = vmatmul.f32.gmra.mxu0 %v139
    %v705 = vpop.f32.mrf.mxu0
    %v706 = vadd.f32 %v404, %v705
    %707 = vdwg.mxu0
    %708 = vmatpush.msra.mxu0 %v270
    %709 = vmatpush.msra.mxu0 %v266
    %710 = vmatpush.msra.mxu0 %v262
    %711 = vmatpush.msra.mxu0 %v258
    %712 = vmatpush.msra.mxu0 %v254
    %713 = vmatpush.msra.mxu0 %v250
    %714 = vmatpush.msra.mxu0 %v246
    %715 = vmatpush.msra.mxu0 %v242
    %716 = vmatpush.msra.mxu0 %v238
    %717 = vmatpush.msra.mxu0 %v234
    %718 = vmatpush.msra.mxu0 %v230
    %719 = vmatpush.msra.mxu0 %v226
    %720 = vmatpush.msra.mxu0 %v222
    %721 = vmatpush.msra.mxu0 %v218
    %722 = vmatpush.msra.mxu0 %v214
    %723 = vmatpush.msra.mxu0 %v210
    %724 = vmatmul.f32.gmra.mxu0 %v136
    %v725 = vpop.f32.mrf.mxu0
    %v726 = vadd.f32 %v703, %v725
    %727 = vmatmul.f32.gmra.mxu0 %v140
    %v728 = vpop.f32.mrf.mxu0
    %v729 = vadd.f32 %v706, %v728
    %730 = vdwg.mxu0
    %731 = vmatpush.msra.mxu0 %v334
    %732 = vmatpush.msra.mxu0 %v330
    %733 = vmatpush.msra.mxu0 %v326
    %734 = vmatpush.msra.mxu0 %v322
    %735 = vmatpush.msra.mxu0 %v318
    %736 = vmatpush.msra.mxu0 %v314
    %737 = vmatpush.msra.mxu0 %v310
    %738 = vmatpush.msra.mxu0 %v306
    %739 = vmatpush.msra.mxu0 %v302
    %740 = vmatpush.msra.mxu0 %v298
    %741 = vmatpush.msra.mxu0 %v294
    %742 = vmatpush.msra.mxu0 %v290
    %743 = vmatpush.msra.mxu0 %v286
    %744 = vmatpush.msra.mxu0 %v282
    %745 = vmatpush.msra.mxu0 %v278
    %746 = vmatpush.msra.mxu0 %v274
    %747 = vmatmul.f32.gmra.mxu0 %v137
    %v748 = vpop.f32.mrf.mxu0
    %v749 = vadd.f32 %v726, %v748
    %750 = vmatmul.f32.gmra.mxu0 %v141
    %v751 = vpop.f32.mrf.mxu0
    %v752 = vadd.f32 %v729, %v751
    %753 = vdwg.mxu0
    %754 = vmatpush.msra.mxu0 %v398
    %755 = vmatpush.msra.mxu0 %v394
    %756 = vmatpush.msra.mxu0 %v390
    %757 = vmatpush.msra.mxu0 %v386
    %758 = vmatpush.msra.mxu0 %v382
    %759 = vmatpush.msra.mxu0 %v378
    %760 = vmatpush.msra.mxu0 %v374
    %761 = vmatpush.msra.mxu0 %v370
    %762 = vmatpush.msra.mxu0 %v366
    %763 = vmatpush.msra.mxu0 %v362
    %764 = vmatpush.msra.mxu0 %v358
    %765 = vmatpush.msra.mxu0 %v354
    %766 = vmatpush.msra.mxu0 %v350
    %767 = vmatpush.msra.mxu0 %v346
    %768 = vmatpush.msra.mxu0 %v342
    %769 = vmatpush.msra.mxu0 %v338
    %770 = vmatmul.f32.gmra.mxu0 %v138
    %v771 = vpop.f32.mrf.mxu0
    %v772 = vadd.f32 %v749, %v771
    %773 = vmatmul.f32.gmra.mxu0 %v142
    %v774 = vpop.f32.mrf.mxu0
    %v775 = vadd.f32 %v752, %v774
    %776 = vdwg.mxu0
    %v777 = vld [vmem:[%s2] sm:$0xff]
    %v778 = vld [vmem:[%s2 + $0x8] sm:$0xff]
    %v779 = vld [vmem:[%s2 + $0x10] sm:$0xff]
    %v780 = vld [vmem:[%s2 + $0x18] sm:$0xff]
    %v781 = vld [vmem:[%s2 + $0x20] sm:$0xff]
    %v782 = vld [vmem:[%s2 + $0x28] sm:$0xff]
    %v783 = vld [vmem:[%s2 + $0x30] sm:$0xff]
    %v784 = vld [vmem:[%s2 + $0x38] sm:$0xff]
    %v785 = vld [vmem:[%s2 + $0x40] sm:$0xff]
    %v786 = vld [vmem:[%s2 + $0x48] sm:$0xff]
    %v787 = vld [vmem:[%s2 + $0x50] sm:$0xff]
    %v788 = vld [vmem:[%s2 + $0x58] sm:$0xff]
    %v789 = vld [vmem:[%s2 + $0x60] sm:$0xff]
    %v790 = vld [vmem:[%s2 + $0x68] sm:$0xff]
    %v791 = vld [vmem:[%s2 + $0x70] sm:$0xff]
    %v792 = vld [vmem:[%s2 + $0x78] sm:$0xff]
    %v793 = vld [vmem:[%s2 + $0x80] sm:$0xff]
    %v794 = vld [vmem:[%s2 + $0x88] sm:$0xff]
    %v795 = vld [vmem:[%s2 + $0x90] sm:$0xff]
    %v796 = vld [vmem:[%s2 + $0x98] sm:$0xff]
    %v797 = vld [vmem:[%s2 + $0xa0] sm:$0xff]
    %v798 = vld [vmem:[%s2 + $0xa8] sm:$0xff]
    %v799 = vld [vmem:[%s2 + $0xb0] sm:$0xff]
    %v800 = vld [vmem:[%s2 + $0xb8] sm:$0xff]
    %v801 = vld [vmem:[%s2 + $0xc0] sm:$0xff]
    %v802 = vld [vmem:[%s2 + $0xc8] sm:$0xff]
    %v803 = vld [vmem:[%s2 + $0xd0] sm:$0xff]
    %v804 = vld [vmem:[%s2 + $0xd8] sm:$0xff]
    %v805 = vld [vmem:[%s2 + $0xe0] sm:$0xff]
    %v806 = vld [vmem:[%s2 + $0xe8] sm:$0xff]
    %v807 = vld [vmem:[%s2 + $0xf0] sm:$0xff]
    %v808 = vld [vmem:[%s2 + $0xf8] sm:$0xff]
    %v809 = vld [vmem:[%s2 + $0x100] sm:$0xff]
    %v810 = vld [vmem:[%s2 + $0x108] sm:$0xff]
    %v811 = vld [vmem:[%s2 + $0x110] sm:$0xff]
    %v812 = vld [vmem:[%s2 + $0x118] sm:$0xff]
    %v813 = vld [vmem:[%s2 + $0x120] sm:$0xff]
    %v814 = vld [vmem:[%s2 + $0x128] sm:$0xff]
    %v815 = vld [vmem:[%s2 + $0x130] sm:$0xff]
    %v816 = vld [vmem:[%s2 + $0x138] sm:$0xff]
    %v817 = vld [vmem:[%s2 + $0x140] sm:$0xff]
    %v818 = vld [vmem:[%s2 + $0x148] sm:$0xff]
    %v819 = vld [vmem:[%s2 + $0x150] sm:$0xff]
    %v820 = vld [vmem:[%s2 + $0x158] sm:$0xff]
    %v821 = vld [vmem:[%s2 + $0x160] sm:$0xff]
    %v822 = vld [vmem:[%s2 + $0x168] sm:$0xff]
    %v823 = vld [vmem:[%s2 + $0x170] sm:$0xff]
    %v824 = vld [vmem:[%s2 + $0x178] sm:$0xff]
    %v825 = vld [vmem:[%s2 + $0x180] sm:$0xff]
    %v826 = vld [vmem:[%s2 + $0x188] sm:$0xff]
    %v827 = vld [vmem:[%s2 + $0x190] sm:$0xff]
    %v828 = vld [vmem:[%s2 + $0x198] sm:$0xff]
    %v829 = vld [vmem:[%s2 + $0x1a0] sm:$0xff]
    %v830 = vld [vmem:[%s2 + $0x1a8] sm:$0xff]
    %v831 = vld [vmem:[%s2 + $0x1b0] sm:$0xff]
    %v832 = vld [vmem:[%s2 + $0x1b8] sm:$0xff]
    %v833 = vld [vmem:[%s2 + $0x1c0] sm:$0xff]
    %v834 = vld [vmem:[%s2 + $0x1c8] sm:$0xff]
    %v835 = vld [vmem:[%s2 + $0x1d0] sm:$0xff]
    %v836 = vld [vmem:[%s2 + $0x1d8] sm:$0xff]
    %v837 = vld [vmem:[%s2 + $0x1e0] sm:$0xff]
    %v838 = vld [vmem:[%s2 + $0x1e8] sm:$0xff]
    %v839 = vld [vmem:[%s2 + $0x1f0] sm:$0xff]
    %v840 = vld [vmem:[%s2 + $0x1f8] sm:$0xff]
    %841 = vmatpush.msra.mxu0 %v837
    %842 = vmatpush.msra.mxu0 %v833
    %843 = vmatpush.msra.mxu0 %v829
    %844 = vmatpush.msra.mxu0 %v825
    %845 = vmatpush.msra.mxu0 %v821
    %846 = vmatpush.msra.mxu0 %v817
    %847 = vmatpush.msra.mxu0 %v813
    %848 = vmatpush.msra.mxu0 %v809
    %849 = vmatpush.msra.mxu0 %v805
    %850 = vmatpush.msra.mxu0 %v801
    %851 = vmatpush.msra.mxu0 %v797
    %852 = vmatpush.msra.mxu0 %v793
    %853 = vmatpush.msra.mxu0 %v789
    %854 = vmatpush.msra.mxu0 %v785
    %855 = vmatpush.msra.mxu0 %v781
    %856 = vmatpush.msra.mxu0 %v777
    %857 = vmatmul.f32.gmra.mxu0 0.0
    %v858 = vpop.f32.mrf.mxu0
    %v859 = vadd.f32 0.0, %v858
    %860 = vdwg.mxu0
    %861 = vmatpush.msra.mxu0 %v838
    %862 = vmatpush.msra.mxu0 %v834
    %863 = vmatpush.msra.mxu0 %v830
    %864 = vmatpush.msra.mxu0 %v826
    %865 = vmatpush.msra.mxu0 %v822
    %866 = vmatpush.msra.mxu0 %v818
    %867 = vmatpush.msra.mxu0 %v814
    %868 = vmatpush.msra.mxu0 %v810
    %869 = vmatpush.msra.mxu0 %v806
    %870 = vmatpush.msra.mxu0 %v802
    %871 = vmatpush.msra.mxu0 %v798
    %872 = vmatpush.msra.mxu0 %v794
    %873 = vmatpush.msra.mxu0 %v790
    %874 = vmatpush.msra.mxu0 %v786
    %875 = vmatpush.msra.mxu0 %v782
    %876 = vmatpush.msra.mxu0 %v778
    %877 = vmatmul.f32.gmra.mxu0 0.0
    %v878 = vpop.f32.mrf.mxu0
    %v879 = vadd.f32 0.0, %v878
    %880 = vdwg.mxu0
    %881 = vmatpush.msra.mxu0 %v839
    %882 = vmatpush.msra.mxu0 %v835
    %883 = vmatpush.msra.mxu0 %v831
    %884 = vmatpush.msra.mxu0 %v827
    %885 = vmatpush.msra.mxu0 %v823
    %886 = vmatpush.msra.mxu0 %v819
    %887 = vmatpush.msra.mxu0 %v815
    %888 = vmatpush.msra.mxu0 %v811
    %889 = vmatpush.msra.mxu0 %v807
    %890 = vmatpush.msra.mxu0 %v803
    %891 = vmatpush.msra.mxu0 %v799
    %892 = vmatpush.msra.mxu0 %v795
    %893 = vmatpush.msra.mxu0 %v791
    %894 = vmatpush.msra.mxu0 %v787
    %895 = vmatpush.msra.mxu0 %v783
    %896 = vmatpush.msra.mxu0 %v779
    %897 = vmatmul.f32.gmra.mxu0 0.0
    %v898 = vpop.f32.mrf.mxu0
    %v899 = vadd.f32 0.0, %v898
    %900 = vdwg.mxu0
    %901 = vmatpush.msra.mxu0 %v840
    %902 = vmatpush.msra.mxu0 %v836
    %903 = vmatpush.msra.mxu0 %v832
    %904 = vmatpush.msra.mxu0 %v828
    %905 = vmatpush.msra.mxu0 %v824
    %906 = vmatpush.msra.mxu0 %v820
    %907 = vmatpush.msra.mxu0 %v816
    %908 = vmatpush.msra.mxu0 %v812
    %909 = vmatpush.msra.mxu0 %v808
    %910 = vmatpush.msra.mxu0 %v804
    %911 = vmatpush.msra.mxu0 %v800
    %912 = vmatpush.msra.mxu0 %v796
    %913 = vmatpush.msra.mxu0 %v792
    %914 = vmatpush.msra.mxu0 %v788
    %915 = vmatpush.msra.mxu0 %v784
    %916 = vmatpush.msra.mxu0 %v780
    %917 = vmatmul.f32.gmra.mxu0 0.0
    %v918 = vpop.f32.mrf.mxu0
    %v919 = vadd.f32 0.0, %v918
    %920 = vdwg.mxu0
    %v921 = vadd.f32 %v496, %v859
    %v922 = vadd.f32 %v588, %v879
    %v923 = vadd.f32 %v680, %v899
    %v924 = vadd.f32 %v772, %v919
    %v925 = vxor.u32 %v921, 2147483648
    %v926 = vmul.f32 %v925, 1.442695
    %v927 = vpow.pop %v926
    %v928 = vadd.f32 %v927, 1.0
    %v929 = vrcp.pop %v928
    %v930 = vmul.f32 %v928, %v929
    %v931 = vsub.f32 1.0, %v930
    %v932 = vmul.f32 %v929, %v931
    %v933 = vadd.f32 %v929, %v932
    %vm934 = vweird.f32 %v928
    %vm935 = vweird.f32 %v929
    %vm936 = vmor %vm934, %vm935
    %v937 = vsel %vm936, %v929, %v933
    %v938 = vand.u32 2147483647, %v928
    %vm939 = vcmp.eq.f32.partialorder %v938, 8.507059e+37
    %v940 = vand.u32 %v928, 2147483648
    %v941 = vor.u32 1.1754944e-38, %v940
    %v942 = vsel %vm939, %v941, %v937
    %v943 = vmul.f32 1.0, %v942
    %v944 = vxor.u32 %v922, 2147483648
    %v945 = vmul.f32 %v944, 1.442695
    %v946 = vpow.pop %v945
    %v947 = vadd.f32 %v946, 1.0
    %v948 = vrcp.pop %v947
    %v949 = vmul.f32 %v947, %v948
    %v950 = vsub.f32 1.0, %v949
    %v951 = vmul.f32 %v948, %v950
    %v952 = vadd.f32 %v948, %v951
    %vm953 = vweird.f32 %v947
    %vm954 = vweird.f32 %v948
    %vm955 = vmor %vm953, %vm954
    %v956 = vsel %vm955, %v948, %v952
    %v957 = vand.u32 2147483647, %v947
    %vm958 = vcmp.eq.f32.partialorder %v957, 8.507059e+37
    %v959 = vand.u32 %v947, 2147483648
    %v960 = vor.u32 1.1754944e-38, %v959
    %v961 = vsel %vm958, %v960, %v956
    %v962 = vmul.f32 1.0, %v961
    %v963 = vtanh.pop %v923
    %v964 = vxor.u32 %v924, 2147483648
    %v965 = vmul.f32 %v964, 1.442695
    %v966 = vpow.pop %v965
    %v967 = vadd.f32 %v966, 1.0
    %v968 = vrcp.pop %v967
    %v969 = vmul.f32 %v967, %v968
    %v970 = vsub.f32 1.0, %v969
    %v971 = vmul.f32 %v968, %v970
    %v972 = vadd.f32 %v968, %v971
    %vm973 = vweird.f32 %v967
    %vm974 = vweird.f32 %v968
    %vm975 = vmor %vm973, %vm974
    %v976 = vsel %vm975, %v968, %v972
    %v977 = vand.u32 2147483647, %v967
    %vm978 = vcmp.eq.f32.partialorder %v977, 8.507059e+37
    %v979 = vand.u32 %v967, 2147483648
    %v980 = vor.u32 1.1754944e-38, %v979
    %v981 = vsel %vm978, %v980, %v976
    %v982 = vmul.f32 1.0, %v981
    %v983 = vmul.f32 %v962, 0.0
    %v984 = vmul.f32 %v943, %v963
    %v985 = vadd.f32 %v983, %v984
    %v986 = vtanh.pop %v985
    %v987 = vmul.f32 %v982, %v986
    %988 = vmatpush.msra.mxu0 %v837
    %989 = vmatpush.msra.mxu0 %v833
    %990 = vmatpush.msra.mxu0 %v829
    %991 = vmatpush.msra.mxu0 %v825
    %992 = vmatpush.msra.mxu0 %v821
    %993 = vmatpush.msra.mxu0 %v817
    %994 = vmatpush.msra.mxu0 %v813
    %995 = vmatpush.msra.mxu0 %v809
    %996 = vmatpush.msra.mxu0 %v805
    %997 = vmatpush.msra.mxu0 %v801
    %998 = vmatpush.msra.mxu0 %v797
    %999 = vmatpush.msra.mxu0 %v793
    %1000 = vmatpush.msra.mxu0 %v789
    %1001 = vmatpush.msra.mxu0 %v785
    %1002 = vmatpush.msra.mxu0 %v781
    %1003 = vmatpush.msra.mxu0 %v777
    %1004 = vmatmul.f32.gmra.mxu0 %v987
    %v1005 = vpop.f32.mrf.mxu0
    %v1006 = vadd.f32 0.0, %v1005
    %1007 = vdwg.mxu0
    %1008 = vmatpush.msra.mxu0 %v838
    %1009 = vmatpush.msra.mxu0 %v834
    %1010 = vmatpush.msra.mxu0 %v830
    %1011 = vmatpush.msra.mxu0 %v826
    %1012 = vmatpush.msra.mxu0 %v822
    %1013 = vmatpush.msra.mxu0 %v818
    %1014 = vmatpush.msra.mxu0 %v814
    %1015 = vmatpush.msra.mxu0 %v810
    %1016 = vmatpush.msra.mxu0 %v806
    %1017 = vmatpush.msra.mxu0 %v802
    %1018 = vmatpush.msra.mxu0 %v798
    %1019 = vmatpush.msra.mxu0 %v794
    %1020 = vmatpush.msra.mxu0 %v790
    %1021 = vmatpush.msra.mxu0 %v786
    %1022 = vmatpush.msra.mxu0 %v782
    %1023 = vmatpush.msra.mxu0 %v778
    %1024 = vmatmul.f32.gmra.mxu0 %v987
    %v1025 = vpop.f32.mrf.mxu0
    %v1026 = vadd.f32 0.0, %v1025
    %1027 = vdwg.mxu0
    %1028 = vmatpush.msra.mxu0 %v839
    %1029 = vmatpush.msra.mxu0 %v835
    %1030 = vmatpush.msra.mxu0 %v831
    %1031 = vmatpush.msra.mxu0 %v827
    %1032 = vmatpush.msra.mxu0 %v823
    %1033 = vmatpush.msra.mxu0 %v819
    %1034 = vmatpush.msra.mxu0 %v815
    %1035 = vmatpush.msra.mxu0 %v811
    %1036 = vmatpush.msra.mxu0 %v807
    %1037 = vmatpush.msra.mxu0 %v803
    %1038 = vmatpush.msra.mxu0 %v799
    %1039 = vmatpush.msra.mxu0 %v795
    %1040 = vmatpush.msra.mxu0 %v791
    %1041 = vmatpush.msra.mxu0 %v787
    %1042 = vmatpush.msra.mxu0 %v783
    %1043 = vmatpush.msra.mxu0 %v779
    %1044 = vmatmul.f32.gmra.mxu0 %v987
    %v1045 = vpop.f32.mrf.mxu0
    %v1046 = vadd.f32 0.0, %v1045
    %1047 = vdwg.mxu0
    %1048 = vmatpush.msra.mxu0 %v840
    %1049 = vmatpush.msra.mxu0 %v836
    %1050 = vmatpush.msra.mxu0 %v832
    %1051 = vmatpush.msra.mxu0 %v828
    %1052 = vmatpush.msra.mxu0 %v824
    %1053 = vmatpush.msra.mxu0 %v820
    %1054 = vmatpush.msra.mxu0 %v816
    %1055 = vmatpush.msra.mxu0 %v812
    %1056 = vmatpush.msra.mxu0 %v808
    %1057 = vmatpush.msra.mxu0 %v804
    %1058 = vmatpush.msra.mxu0 %v800
    %1059 = vmatpush.msra.mxu0 %v796
    %1060 = vmatpush.msra.mxu0 %v792
    %1061 = vmatpush.msra.mxu0 %v788
    %1062 = vmatpush.msra.mxu0 %v784
    %1063 = vmatpush.msra.mxu0 %v780
    %1064 = vmatmul.f32.gmra.mxu0 %v987
    %v1065 = vpop.f32.mrf.mxu0
    %v1066 = vadd.f32 0.0, %v1065
    %1067 = vdwg.mxu0
    %v1068 = vadd.f32 %v499, %v1006
    %v1069 = vadd.f32 %v591, %v1026
    %v1070 = vadd.f32 %v683, %v1046
    %v1071 = vadd.f32 %v775, %v1066
    %v1072 = vxor.u32 %v1068, 2147483648
    %v1073 = vmul.f32 %v1072, 1.442695
    %v1074 = vpow.pop %v1073
    %v1075 = vadd.f32 %v1074, 1.0
    %v1076 = vrcp.pop %v1075
    %v1077 = vmul.f32 %v1075, %v1076
    %v1078 = vsub.f32 1.0, %v1077
    %v1079 = vmul.f32 %v1076, %v1078
    %v1080 = vadd.f32 %v1076, %v1079
    %vm1081 = vweird.f32 %v1075
    %vm1082 = vweird.f32 %v1076
    %vm1083 = vmor %vm1081, %vm1082
    %v1084 = vsel %vm1083, %v1076, %v1080
    %v1085 = vand.u32 2147483647, %v1075
    %vm1086 = vcmp.eq.f32.partialorder %v1085, 8.507059e+37
    %v1087 = vand.u32 %v1075, 2147483648
    %v1088 = vor.u32 1.1754944e-38, %v1087
    %v1089 = vsel %vm1086, %v1088, %v1084
    %v1090 = vmul.f32 1.0, %v1089
    %v1091 = vxor.u32 %v1069, 2147483648
    %v1092 = vmul.f32 %v1091, 1.442695
    %v1093 = vpow.pop %v1092
    %v1094 = vadd.f32 %v1093, 1.0
    %v1095 = vrcp.pop %v1094
    %v1096 = vmul.f32 %v1094, %v1095
    %v1097 = vsub.f32 1.0, %v1096
    %v1098 = vmul.f32 %v1095, %v1097
    %v1099 = vadd.f32 %v1095, %v1098
    %vm1100 = vweird.f32 %v1094
    %vm1101 = vweird.f32 %v1095
    %vm1102 = vmor %vm1100, %vm1101
    %v1103 = vsel %vm1102, %v1095, %v1099
    %v1104 = vand.u32 2147483647, %v1094
    %vm1105 = vcmp.eq.f32.partialorder %v1104, 8.507059e+37
    %v1106 = vand.u32 %v1094, 2147483648
    %v1107 = vor.u32 1.1754944e-38, %v1106
    %v1108 = vsel %vm1105, %v1107, %v1103
    %v1109 = vmul.f32 1.0, %v1108
    %v1110 = vtanh.pop %v1070
    %v1111 = vxor.u32 %v1071, 2147483648
    %v1112 = vmul.f32 %v1111, 1.442695
    %v1113 = vpow.pop %v1112
    %v1114 = vadd.f32 %v1113, 1.0
    %v1115 = vrcp.pop %v1114
    %v1116 = vmul.f32 %v1114, %v1115
    %v1117 = vsub.f32 1.0, %v1116
    %v1118 = vmul.f32 %v1115, %v1117
    %v1119 = vadd.f32 %v1115, %v1118
    %vm1120 = vweird.f32 %v1114
    %vm1121 = vweird.f32 %v1115
    %vm1122 = vmor %vm1120, %vm1121
    %v1123 = vsel %vm1122, %v1115, %v1119
    %v1124 = vand.u32 2147483647, %v1114
    %vm1125 = vcmp.eq.f32.partialorder %v1124, 8.507059e+37
    %v1126 = vand.u32 %v1114, 2147483648
    %v1127 = vor.u32 1.1754944e-38, %v1126
    %v1128 = vsel %vm1125, %v1127, %v1123
    %v1129 = vmul.f32 1.0, %v1128
    %v1130 = vmul.f32 %v1109, %v985
    %v1131 = vmul.f32 %v1090, %v1110
    %v1132 = vadd.f32 %v1130, %v1131
    %v1133 = vtanh.pop %v1132
    %v1134 = vmul.f32 %v1129, %v1133
    %v1135 = vld [vmem:[#allocation4] sm:$0xff]
    %v1136 = vld [vmem:[#allocation4 + $0x8] sm:$0xff]
    %v1137 = vld [vmem:[#allocation4 + $0x10] sm:$0xff]
    %v1138 = vld [vmem:[#allocation4 + $0x18] sm:$0xff]
    %v1139 = vld [vmem:[#allocation4 + $0x20] sm:$0xff]
    %v1140 = vld [vmem:[#allocation4 + $0x28] sm:$0xff]
    %v1141 = vld [vmem:[#allocation4 + $0x30] sm:$0xff]
    %v1142 = vld [vmem:[#allocation4 + $0x38] sm:$0xff]
    %v1143 = vld [vmem:[#allocation4 + $0x40] sm:$0xff]
    %v1144 = vld [vmem:[#allocation4 + $0x48] sm:$0xff]
    %v1145 = vld [vmem:[#allocation4 + $0x50] sm:$0xff]
    %v1146 = vld [vmem:[#allocation4 + $0x58] sm:$0xff]
    %v1147 = vld [vmem:[#allocation4 + $0x60] sm:$0xff]
    %v1148 = vld [vmem:[#allocation4 + $0x68] sm:$0xff]
    %v1149 = vld [vmem:[#allocation4 + $0x70] sm:$0xff]
    %v1150 = vld [vmem:[#allocation4 + $0x78] sm:$0xff]
    %v1151 = vld [vmem:[#allocation4 + $0x80] sm:$0xff]
    %v1152 = vld [vmem:[#allocation4 + $0x88] sm:$0xff]
    %v1153 = vld [vmem:[#allocation4 + $0x90] sm:$0xff]
    %v1154 = vld [vmem:[#allocation4 + $0x98] sm:$0xff]
    %v1155 = vld [vmem:[#allocation4 + $0xa0] sm:$0xff]
    %v1156 = vld [vmem:[#allocation4 + $0xa8] sm:$0xff]
    %v1157 = vld [vmem:[#allocation4 + $0xb0] sm:$0xff]
    %v1158 = vld [vmem:[#allocation4 + $0xb8] sm:$0xff]
    %v1159 = vld [vmem:[#allocation4 + $0xc0] sm:$0xff]
    %v1160 = vld [vmem:[#allocation4 + $0xc8] sm:$0xff]
    %v1161 = vld [vmem:[#allocation4 + $0xd0] sm:$0xff]
    %v1162 = vld [vmem:[#allocation4 + $0xd8] sm:$0xff]
    %v1163 = vld [vmem:[#allocation4 + $0xe0] sm:$0xff]
    %v1164 = vld [vmem:[#allocation4 + $0xe8] sm:$0xff]
    %v1165 = vld [vmem:[#allocation4 + $0xf0] sm:$0xff]
    %v1166 = vld [vmem:[#allocation4 + $0xf8] sm:$0xff]
    %v1167 = vld [vmem:[#allocation4 + $0x100] sm:$0xff]
    %v1168 = vld [vmem:[#allocation4 + $0x108] sm:$0xff]
    %v1169 = vld [vmem:[#allocation4 + $0x110] sm:$0xff]
    %v1170 = vld [vmem:[#allocation4 + $0x118] sm:$0xff]
    %v1171 = vld [vmem:[#allocation4 + $0x120] sm:$0xff]
    %v1172 = vld [vmem:[#allocation4 + $0x128] sm:$0xff]
    %v1173 = vld [vmem:[#allocation4 + $0x130] sm:$0xff]
    %v1174 = vld [vmem:[#allocation4 + $0x138] sm:$0xff]
    %v1175 = vld [vmem:[#allocation4 + $0x140] sm:$0xff]
    %v1176 = vld [vmem:[#allocation4 + $0x148] sm:$0xff]
    %v1177 = vld [vmem:[#allocation4 + $0x150] sm:$0xff]
    %v1178 = vld [vmem:[#allocation4 + $0x158] sm:$0xff]
    %v1179 = vld [vmem:[#allocation4 + $0x160] sm:$0xff]
    %v1180 = vld [vmem:[#allocation4 + $0x168] sm:$0xff]
    %v1181 = vld [vmem:[#allocation4 + $0x170] sm:$0xff]
    %v1182 = vld [vmem:[#allocation4 + $0x178] sm:$0xff]
    %v1183 = vld [vmem:[#allocation4 + $0x180] sm:$0xff]
    %v1184 = vld [vmem:[#allocation4 + $0x188] sm:$0xff]
    %v1185 = vld [vmem:[#allocation4 + $0x190] sm:$0xff]
    %v1186 = vld [vmem:[#allocation4 + $0x198] sm:$0xff]
    %v1187 = vld [vmem:[#allocation4 + $0x1a0] sm:$0xff]
    %v1188 = vld [vmem:[#allocation4 + $0x1a8] sm:$0xff]
    %v1189 = vld [vmem:[#allocation4 + $0x1b0] sm:$0xff]
    %v1190 = vld [vmem:[#allocation4 + $0x1b8] sm:$0xff]
    %v1191 = vld [vmem:[#allocation4 + $0x1c0] sm:$0xff]
    %v1192 = vld [vmem:[#allocation4 + $0x1c8] sm:$0xff]
    %v1193 = vld [vmem:[#allocation4 + $0x1d0] sm:$0xff]
    %v1194 = vld [vmem:[#allocation4 + $0x1d8] sm:$0xff]
    %v1195 = vld [vmem:[#allocation4 + $0x1e0] sm:$0xff]
    %v1196 = vld [vmem:[#allocation4 + $0x1e8] sm:$0xff]
    %v1197 = vld [vmem:[#allocation4 + $0x1f0] sm:$0xff]
    %v1198 = vld [vmem:[#allocation4 + $0x1f8] sm:$0xff]
    %v1199 = vld [vmem:[%s6] sm:$0xf]
    %v1201 = vperm.slane %v1199, 0
    %v1202 = vperm.slane %v1199, 1
    %v1203 = vperm.slane %v1199, 2
    %v1204 = vperm.slane %v1199, 3
    %1209 = vmatpush.msra.mxu0 %v1195
    %1210 = vmatpush.msra.mxu0 %v1191
    %1211 = vmatpush.msra.mxu0 %v1187
    %1212 = vmatpush.msra.mxu0 %v1183
    %1213 = vmatpush.msra.mxu0 %v1179
    %1214 = vmatpush.msra.mxu0 %v1175
    %1215 = vmatpush.msra.mxu0 %v1171
    %1216 = vmatpush.msra.mxu0 %v1167
    %1217 = vmatpush.msra.mxu0 %v1163
    %1218 = vmatpush.msra.mxu0 %v1159
    %1219 = vmatpush.msra.mxu0 %v1155
    %1220 = vmatpush.msra.mxu0 %v1151
    %1221 = vmatpush.msra.mxu0 %v1147
    %1222 = vmatpush.msra.mxu0 %v1143
    %1223 = vmatpush.msra.mxu0 %v1139
    %1224 = vmatpush.msra.mxu0 %v1135
    %1225 = vmatmul.f32.gmra.mxu0 %v987
    %v1226 = vpop.f32.mrf.mxu0
    %v1227 = vadd.f32 %v1201, %v1226
    %1228 = vmatmul.f32.gmra.mxu0 %v1134
    %v1229 = vpop.f32.mrf.mxu0
    %v1230 = vadd.f32 %v1201, %v1229
    %1231 = vdwg.mxu0
    %1232 = vmatpush.msra.mxu0 %v1196
    %1233 = vmatpush.msra.mxu0 %v1192
    %1234 = vmatpush.msra.mxu0 %v1188
    %1235 = vmatpush.msra.mxu0 %v1184
    %1236 = vmatpush.msra.mxu0 %v1180
    %1237 = vmatpush.msra.mxu0 %v1176
    %1238 = vmatpush.msra.mxu0 %v1172
    %1239 = vmatpush.msra.mxu0 %v1168
    %1240 = vmatpush.msra.mxu0 %v1164
    %1241 = vmatpush.msra.mxu0 %v1160
    %1242 = vmatpush.msra.mxu0 %v1156
    %1243 = vmatpush.msra.mxu0 %v1152
    %1244 = vmatpush.msra.mxu0 %v1148
    %1245 = vmatpush.msra.mxu0 %v1144
    %1246 = vmatpush.msra.mxu0 %v1140
    %1247 = vmatpush.msra.mxu0 %v1136
    %1248 = vmatmul.f32.gmra.mxu0 %v987
    %v1249 = vpop.f32.mrf.mxu0
    %v1250 = vadd.f32 %v1202, %v1249
    %1251 = vmatmul.f32.gmra.mxu0 %v1134
    %v1252 = vpop.f32.mrf.mxu0
    %v1253 = vadd.f32 %v1202, %v1252
    %1254 = vdwg.mxu0
    %1255 = vmatpush.msra.mxu0 %v1197
    %1256 = vmatpush.msra.mxu0 %v1193
    %1257 = vmatpush.msra.mxu0 %v1189
    %1258 = vmatpush.msra.mxu0 %v1185
    %1259 = vmatpush.msra.mxu0 %v1181
    %1260 = vmatpush.msra.mxu0 %v1177
    %1261 = vmatpush.msra.mxu0 %v1173
    %1262 = vmatpush.msra.mxu0 %v1169
    %1263 = vmatpush.msra.mxu0 %v1165
    %1264 = vmatpush.msra.mxu0 %v1161
    %1265 = vmatpush.msra.mxu0 %v1157
    %1266 = vmatpush.msra.mxu0 %v1153
    %1267 = vmatpush.msra.mxu0 %v1149
    %1268 = vmatpush.msra.mxu0 %v1145
    %1269 = vmatpush.msra.mxu0 %v1141
    %1270 = vmatpush.msra.mxu0 %v1137
    %1271 = vmatmul.f32.gmra.mxu0 %v987
    %v1272 = vpop.f32.mrf.mxu0
    %v1273 = vadd.f32 %v1203, %v1272
    %1274 = vmatmul.f32.gmra.mxu0 %v1134
    %v1275 = vpop.f32.mrf.mxu0
    %v1276 = vadd.f32 %v1203, %v1275
    %1277 = vdwg.mxu0
    %1278 = vmatpush.msra.mxu0 %v1198
    %1279 = vmatpush.msra.mxu0 %v1194
    %1280 = vmatpush.msra.mxu0 %v1190
    %1281 = vmatpush.msra.mxu0 %v1186
    %1282 = vmatpush.msra.mxu0 %v1182
    %1283 = vmatpush.msra.mxu0 %v1178
    %1284 = vmatpush.msra.mxu0 %v1174
    %1285 = vmatpush.msra.mxu0 %v1170
    %1286 = vmatpush.msra.mxu0 %v1166
    %1287 = vmatpush.msra.mxu0 %v1162
    %1288 = vmatpush.msra.mxu0 %v1158
    %1289 = vmatpush.msra.mxu0 %v1154
    %1290 = vmatpush.msra.mxu0 %v1150
    %1291 = vmatpush.msra.mxu0 %v1146
    %1292 = vmatpush.msra.mxu0 %v1142
    %1293 = vmatpush.msra.mxu0 %v1138
    %1294 = vmatmul.f32.gmra.mxu0 %v987
    %v1295 = vpop.f32.mrf.mxu0
    %v1296 = vadd.f32 %v1204, %v1295
    %1297 = vmatmul.f32.gmra.mxu0 %v1134
    %v1298 = vpop.f32.mrf.mxu0
    %v1299 = vadd.f32 %v1204, %v1298
    %1300 = vdwg.mxu0
    %v1301 = vld [vmem:[#allocation6] sm:$0xff]
    %v1302 = vld [vmem:[#allocation6 + $0x8] sm:$0xff]
    %v1303 = vld [vmem:[#allocation6 + $0x10] sm:$0xff]
    %v1304 = vld [vmem:[#allocation6 + $0x18] sm:$0xff]
    %v1305 = vld [vmem:[#allocation6 + $0x20] sm:$0xff]
    %v1306 = vld [vmem:[#allocation6 + $0x28] sm:$0xff]
    %v1307 = vld [vmem:[#allocation6 + $0x30] sm:$0xff]
    %v1308 = vld [vmem:[#allocation6 + $0x38] sm:$0xff]
    %v1309 = vld [vmem:[#allocation6 + $0x40] sm:$0xff]
    %v1310 = vld [vmem:[#allocation6 + $0x48] sm:$0xff]
    %v1311 = vld [vmem:[#allocation6 + $0x50] sm:$0xff]
    %v1312 = vld [vmem:[#allocation6 + $0x58] sm:$0xff]
    %v1313 = vld [vmem:[#allocation6 + $0x60] sm:$0xff]
    %v1314 = vld [vmem:[#allocation6 + $0x68] sm:$0xff]
    %v1315 = vld [vmem:[#allocation6 + $0x70] sm:$0xff]
    %v1316 = vld [vmem:[#allocation6 + $0x78] sm:$0xff]
    %v1317 = vld [vmem:[#allocation6 + $0x80] sm:$0xff]
    %v1318 = vld [vmem:[#allocation6 + $0x88] sm:$0xff]
    %v1319 = vld [vmem:[#allocation6 + $0x90] sm:$0xff]
    %v1320 = vld [vmem:[#allocation6 + $0x98] sm:$0xff]
    %v1321 = vld [vmem:[#allocation6 + $0xa0] sm:$0xff]
    %v1322 = vld [vmem:[#allocation6 + $0xa8] sm:$0xff]
    %v1323 = vld [vmem:[#allocation6 + $0xb0] sm:$0xff]
    %v1324 = vld [vmem:[#allocation6 + $0xb8] sm:$0xff]
    %v1325 = vld [vmem:[#allocation6 + $0xc0] sm:$0xff]
    %v1326 = vld [vmem:[#allocation6 + $0xc8] sm:$0xff]
    %v1327 = vld [vmem:[#allocation6 + $0xd0] sm:$0xff]
    %v1328 = vld [vmem:[#allocation6 + $0xd8] sm:$0xff]
    %v1329 = vld [vmem:[#allocation6 + $0xe0] sm:$0xff]
    %v1330 = vld [vmem:[#allocation6 + $0xe8] sm:$0xff]
    %v1331 = vld [vmem:[#allocation6 + $0xf0] sm:$0xff]
    %v1332 = vld [vmem:[#allocation6 + $0xf8] sm:$0xff]
    %v1333 = vld [vmem:[#allocation6 + $0x100] sm:$0xff]
    %v1334 = vld [vmem:[#allocation6 + $0x108] sm:$0xff]
    %v1335 = vld [vmem:[#allocation6 + $0x110] sm:$0xff]
    %v1336 = vld [vmem:[#allocation6 + $0x118] sm:$0xff]
    %v1337 = vld [vmem:[#allocation6 + $0x120] sm:$0xff]
    %v1338 = vld [vmem:[#allocation6 + $0x128] sm:$0xff]
    %v1339 = vld [vmem:[#allocation6 + $0x130] sm:$0xff]
    %v1340 = vld [vmem:[#allocation6 + $0x138] sm:$0xff]
    %v1341 = vld [vmem:[#allocation6 + $0x140] sm:$0xff]
    %v1342 = vld [vmem:[#allocation6 + $0x148] sm:$0xff]
    %v1343 = vld [vmem:[#allocation6 + $0x150] sm:$0xff]
    %v1344 = vld [vmem:[#allocation6 + $0x158] sm:$0xff]
    %v1345 = vld [vmem:[#allocation6 + $0x160] sm:$0xff]
    %v1346 = vld [vmem:[#allocation6 + $0x168] sm:$0xff]
    %v1347 = vld [vmem:[#allocation6 + $0x170] sm:$0xff]
    %v1348 = vld [vmem:[#allocation6 + $0x178] sm:$0xff]
    %v1349 = vld [vmem:[#allocation6 + $0x180] sm:$0xff]
    %v1350 = vld [vmem:[#allocation6 + $0x188] sm:$0xff]
    %v1351 = vld [vmem:[#allocation6 + $0x190] sm:$0xff]
    %v1352 = vld [vmem:[#allocation6 + $0x198] sm:$0xff]
    %v1353 = vld [vmem:[#allocation6 + $0x1a0] sm:$0xff]
    %v1354 = vld [vmem:[#allocation6 + $0x1a8] sm:$0xff]
    %v1355 = vld [vmem:[#allocation6 + $0x1b0] sm:$0xff]
    %v1356 = vld [vmem:[#allocation6 + $0x1b8] sm:$0xff]
    %v1357 = vld [vmem:[#allocation6 + $0x1c0] sm:$0xff]
    %v1358 = vld [vmem:[#allocation6 + $0x1c8] sm:$0xff]
    %v1359 = vld [vmem:[#allocation6 + $0x1d0] sm:$0xff]
    %v1360 = vld [vmem:[#allocation6 + $0x1d8] sm:$0xff]
    %v1361 = vld [vmem:[#allocation6 + $0x1e0] sm:$0xff]
    %v1362 = vld [vmem:[#allocation6 + $0x1e8] sm:$0xff]
    %v1363 = vld [vmem:[#allocation6 + $0x1f0] sm:$0xff]
    %v1364 = vld [vmem:[#allocation6 + $0x1f8] sm:$0xff]
    %1365 = vmatpush.msra.mxu0 %v1361
    %1366 = vmatpush.msra.mxu0 %v1357
    %1367 = vmatpush.msra.mxu0 %v1353
    %1368 = vmatpush.msra.mxu0 %v1349
    %1369 = vmatpush.msra.mxu0 %v1345
    %1370 = vmatpush.msra.mxu0 %v1341
    %1371 = vmatpush.msra.mxu0 %v1337
    %1372 = vmatpush.msra.mxu0 %v1333
    %1373 = vmatpush.msra.mxu0 %v1329
    %1374 = vmatpush.msra.mxu0 %v1325
    %1375 = vmatpush.msra.mxu0 %v1321
    %1376 = vmatpush.msra.mxu0 %v1317
    %1377 = vmatpush.msra.mxu0 %v1313
    %1378 = vmatpush.msra.mxu0 %v1309
    %1379 = vmatpush.msra.mxu0 %v1305
    %1380 = vmatpush.msra.mxu0 %v1301
    %1381 = vmatmul.f32.gmra.mxu0 0.0
    %v1382 = vpop.f32.mrf.mxu0
    %v1383 = vadd.f32 0.0, %v1382
    %1384 = vdwg.mxu0
    %1385 = vmatpush.msra.mxu0 %v1362
    %1386 = vmatpush.msra.mxu0 %v1358
    %1387 = vmatpush.msra.mxu0 %v1354
    %1388 = vmatpush.msra.mxu0 %v1350
    %1389 = vmatpush.msra.mxu0 %v1346
    %1390 = vmatpush.msra.mxu0 %v1342
    %1391 = vmatpush.msra.mxu0 %v1338
    %1392 = vmatpush.msra.mxu0 %v1334
    %1393 = vmatpush.msra.mxu0 %v1330
    %1394 = vmatpush.msra.mxu0 %v1326
    %1395 = vmatpush.msra.mxu0 %v1322
    %1396 = vmatpush.msra.mxu0 %v1318
    %1397 = vmatpush.msra.mxu0 %v1314
    %1398 = vmatpush.msra.mxu0 %v1310
    %1399 = vmatpush.msra.mxu0 %v1306
    %1400 = vmatpush.msra.mxu0 %v1302
    %1401 = vmatmul.f32.gmra.mxu0 0.0
    %v1402 = vpop.f32.mrf.mxu0
    %v1403 = vadd.f32 0.0, %v1402
    %1404 = vdwg.mxu0
    %1405 = vmatpush.msra.mxu0 %v1363
    %1406 = vmatpush.msra.mxu0 %v1359
    %1407 = vmatpush.msra.mxu0 %v1355
    %1408 = vmatpush.msra.mxu0 %v1351
    %1409 = vmatpush.msra.mxu0 %v1347
    %1410 = vmatpush.msra.mxu0 %v1343
    %1411 = vmatpush.msra.mxu0 %v1339
    %1412 = vmatpush.msra.mxu0 %v1335
    %1413 = vmatpush.msra.mxu0 %v1331
    %1414 = vmatpush.msra.mxu0 %v1327
    %1415 = vmatpush.msra.mxu0 %v1323
    %1416 = vmatpush.msra.mxu0 %v1319
    %1417 = vmatpush.msra.mxu0 %v1315
    %1418 = vmatpush.msra.mxu0 %v1311
    %1419 = vmatpush.msra.mxu0 %v1307
    %1420 = vmatpush.msra.mxu0 %v1303
    %1421 = vmatmul.f32.gmra.mxu0 0.0
    %v1422 = vpop.f32.mrf.mxu0
    %v1423 = vadd.f32 0.0, %v1422
    %1424 = vdwg.mxu0
    %1425 = vmatpush.msra.mxu0 %v1364
    %1426 = vmatpush.msra.mxu0 %v1360
    %1427 = vmatpush.msra.mxu0 %v1356
    %1428 = vmatpush.msra.mxu0 %v1352
    %1429 = vmatpush.msra.mxu0 %v1348
    %1430 = vmatpush.msra.mxu0 %v1344
    %1431 = vmatpush.msra.mxu0 %v1340
    %1432 = vmatpush.msra.mxu0 %v1336
    %1433 = vmatpush.msra.mxu0 %v1332
    %1434 = vmatpush.msra.mxu0 %v1328
    %1435 = vmatpush.msra.mxu0 %v1324
    %1436 = vmatpush.msra.mxu0 %v1320
    %1437 = vmatpush.msra.mxu0 %v1316
    %1438 = vmatpush.msra.mxu0 %v1312
    %1439 = vmatpush.msra.mxu0 %v1308
    %1440 = vmatpush.msra.mxu0 %v1304
    %1441 = vmatmul.f32.gmra.mxu0 0.0
    %v1442 = vpop.f32.mrf.mxu0
    %v1443 = vadd.f32 0.0, %v1442
    %1444 = vdwg.mxu0
    %v1445 = vadd.f32 %v1227, %v1383
    %v1446 = vadd.f32 %v1250, %v1403
    %v1447 = vadd.f32 %v1273, %v1423
    %v1448 = vadd.f32 %v1296, %v1443
    %v1449 = vxor.u32 %v1445, 2147483648
    %v1450 = vmul.f32 %v1449, 1.442695
    %v1451 = vpow.pop %v1450
    %v1452 = vadd.f32 %v1451, 1.0
    %v1453 = vrcp.pop %v1452
    %v1454 = vmul.f32 %v1452, %v1453
    %v1455 = vsub.f32 1.0, %v1454
    %v1456 = vmul.f32 %v1453, %v1455
    %v1457 = vadd.f32 %v1453, %v1456
    %vm1458 = vweird.f32 %v1452
    %vm1459 = vweird.f32 %v1453
    %vm1460 = vmor %vm1458, %vm1459
    %v1461 = vsel %vm1460, %v1453, %v1457
    %v1462 = vand.u32 2147483647, %v1452
    %vm1463 = vcmp.eq.f32.partialorder %v1462, 8.507059e+37
    %v1464 = vand.u32 %v1452, 2147483648
    %v1465 = vor.u32 1.1754944e-38, %v1464
    %v1466 = vsel %vm1463, %v1465, %v1461
    %v1467 = vmul.f32 1.0, %v1466
    %v1468 = vxor.u32 %v1446, 2147483648
    %v1469 = vmul.f32 %v1468, 1.442695
    %v1470 = vpow.pop %v1469
    %v1471 = vadd.f32 %v1470, 1.0
    %v1472 = vrcp.pop %v1471
    %v1473 = vmul.f32 %v1471, %v1472
    %v1474 = vsub.f32 1.0, %v1473
    %v1475 = vmul.f32 %v1472, %v1474
    %v1476 = vadd.f32 %v1472, %v1475
    %vm1477 = vweird.f32 %v1471
    %vm1478 = vweird.f32 %v1472
    %vm1479 = vmor %vm1477, %vm1478
    %v1480 = vsel %vm1479, %v1472, %v1476
    %v1481 = vand.u32 2147483647, %v1471
    %vm1482 = vcmp.eq.f32.partialorder %v1481, 8.507059e+37
    %v1483 = vand.u32 %v1471, 2147483648
    %v1484 = vor.u32 1.1754944e-38, %v1483
    %v1485 = vsel %vm1482, %v1484, %v1480
    %v1486 = vmul.f32 1.0, %v1485
    %v1487 = vtanh.pop %v1447
    %v1488 = vxor.u32 %v1448, 2147483648
    %v1489 = vmul.f32 %v1488, 1.442695
    %v1490 = vpow.pop %v1489
    %v1491 = vadd.f32 %v1490, 1.0
    %v1492 = vrcp.pop %v1491
    %v1493 = vmul.f32 %v1491, %v1492
    %v1494 = vsub.f32 1.0, %v1493
    %v1495 = vmul.f32 %v1492, %v1494
    %v1496 = vadd.f32 %v1492, %v1495
    %vm1497 = vweird.f32 %v1491
    %vm1498 = vweird.f32 %v1492
    %vm1499 = vmor %vm1497, %vm1498
    %v1500 = vsel %vm1499, %v1492, %v1496
    %v1501 = vand.u32 2147483647, %v1491
    %vm1502 = vcmp.eq.f32.partialorder %v1501, 8.507059e+37
    %v1503 = vand.u32 %v1491, 2147483648
    %v1504 = vor.u32 1.1754944e-38, %v1503
    %v1505 = vsel %vm1502, %v1504, %v1500
    %v1506 = vmul.f32 1.0, %v1505
    %v1507 = vmul.f32 %v1486, 0.0
    %v1508 = vmul.f32 %v1467, %v1487
    %v1509 = vadd.f32 %v1507, %v1508
    %v1510 = vtanh.pop %v1509
    %v1511 = vmul.f32 %v1506, %v1510
    %1512 = vmatpush.msra.mxu0 %v1361
    %1513 = vmatpush.msra.mxu0 %v1357
    %1514 = vmatpush.msra.mxu0 %v1353
    %1515 = vmatpush.msra.mxu0 %v1349
    %1516 = vmatpush.msra.mxu0 %v1345
    %1517 = vmatpush.msra.mxu0 %v1341
    %1518 = vmatpush.msra.mxu0 %v1337
    %1519 = vmatpush.msra.mxu0 %v1333
    %1520 = vmatpush.msra.mxu0 %v1329
    %1521 = vmatpush.msra.mxu0 %v1325
    %1522 = vmatpush.msra.mxu0 %v1321
    %1523 = vmatpush.msra.mxu0 %v1317
    %1524 = vmatpush.msra.mxu0 %v1313
    %1525 = vmatpush.msra.mxu0 %v1309
    %1526 = vmatpush.msra.mxu0 %v1305
    %1527 = vmatpush.msra.mxu0 %v1301
    %1528 = vmatmul.f32.gmra.mxu0 %v1511
    %v1529 = vpop.f32.mrf.mxu0
    %v1530 = vadd.f32 0.0, %v1529
    %1531 = vdwg.mxu0
    %1532 = vmatpush.msra.mxu0 %v1362
    %1533 = vmatpush.msra.mxu0 %v1358
    %1534 = vmatpush.msra.mxu0 %v1354
    %1535 = vmatpush.msra.mxu0 %v1350
    %1536 = vmatpush.msra.mxu0 %v1346
    %1537 = vmatpush.msra.mxu0 %v1342
    %1538 = vmatpush.msra.mxu0 %v1338
    %1539 = vmatpush.msra.mxu0 %v1334
    %1540 = vmatpush.msra.mxu0 %v1330
    %1541 = vmatpush.msra.mxu0 %v1326
    %1542 = vmatpush.msra.mxu0 %v1322
    %1543 = vmatpush.msra.mxu0 %v1318
    %1544 = vmatpush.msra.mxu0 %v1314
    %1545 = vmatpush.msra.mxu0 %v1310
    %1546 = vmatpush.msra.mxu0 %v1306
    %1547 = vmatpush.msra.mxu0 %v1302
    %1548 = vmatmul.f32.gmra.mxu0 %v1511
    %v1549 = vpop.f32.mrf.mxu0
    %v1550 = vadd.f32 0.0, %v1549
    %1551 = vdwg.mxu0
    %1552 = vmatpush.msra.mxu0 %v1363
    %1553 = vmatpush.msra.mxu0 %v1359
    %1554 = vmatpush.msra.mxu0 %v1355
    %1555 = vmatpush.msra.mxu0 %v1351
    %1556 = vmatpush.msra.mxu0 %v1347
    %1557 = vmatpush.msra.mxu0 %v1343
    %1558 = vmatpush.msra.mxu0 %v1339
    %1559 = vmatpush.msra.mxu0 %v1335
    %1560 = vmatpush.msra.mxu0 %v1331
    %1561 = vmatpush.msra.mxu0 %v1327
    %1562 = vmatpush.msra.mxu0 %v1323
    %1563 = vmatpush.msra.mxu0 %v1319
    %1564 = vmatpush.msra.mxu0 %v1315
    %1565 = vmatpush.msra.mxu0 %v1311
    %1566 = vmatpush.msra.mxu0 %v1307
    %1567 = vmatpush.msra.mxu0 %v1303
    %1568 = vmatmul.f32.gmra.mxu0 %v1511
    %v1569 = vpop.f32.mrf.mxu0
    %v1570 = vadd.f32 0.0, %v1569
    %1571 = vdwg.mxu0
    %1572 = vmatpush.msra.mxu0 %v1364
    %1573 = vmatpush.msra.mxu0 %v1360
    %1574 = vmatpush.msra.mxu0 %v1356
    %1575 = vmatpush.msra.mxu0 %v1352
    %1576 = vmatpush.msra.mxu0 %v1348
    %1577 = vmatpush.msra.mxu0 %v1344
    %1578 = vmatpush.msra.mxu0 %v1340
    %1579 = vmatpush.msra.mxu0 %v1336
    %1580 = vmatpush.msra.mxu0 %v1332
    %1581 = vmatpush.msra.mxu0 %v1328
    %1582 = vmatpush.msra.mxu0 %v1324
    %1583 = vmatpush.msra.mxu0 %v1320
    %1584 = vmatpush.msra.mxu0 %v1316
    %1585 = vmatpush.msra.mxu0 %v1312
    %1586 = vmatpush.msra.mxu0 %v1308
    %1587 = vmatpush.msra.mxu0 %v1304
    %1588 = vmatmul.f32.gmra.mxu0 %v1511
    %v1589 = vpop.f32.mrf.mxu0
    %v1590 = vadd.f32 0.0, %v1589
    %1591 = vdwg.mxu0
    %v1592 = vadd.f32 %v1230, %v1530
    %v1593 = vadd.f32 %v1253, %v1550
    %v1594 = vadd.f32 %v1276, %v1570
    %v1595 = vadd.f32 %v1299, %v1590
    %v1596 = vxor.u32 %v1592, 2147483648
    %v1597 = vmul.f32 %v1596, 1.442695
    %v1598 = vpow.pop %v1597
    %v1599 = vadd.f32 %v1598, 1.0
    %v1600 = vrcp.pop %v1599
    %v1601 = vmul.f32 %v1599, %v1600
    %v1602 = vsub.f32 1.0, %v1601
    %v1603 = vmul.f32 %v1600, %v1602
    %v1604 = vadd.f32 %v1600, %v1603
    %vm1605 = vweird.f32 %v1599
    %vm1606 = vweird.f32 %v1600
    %vm1607 = vmor %vm1605, %vm1606
    %v1608 = vsel %vm1607, %v1600, %v1604
    %v1609 = vand.u32 2147483647, %v1599
    %vm1610 = vcmp.eq.f32.partialorder %v1609, 8.507059e+37
    %v1611 = vand.u32 %v1599, 2147483648
    %v1612 = vor.u32 1.1754944e-38, %v1611
    %v1613 = vsel %vm1610, %v1612, %v1608
    %v1614 = vmul.f32 1.0, %v1613
    %v1615 = vxor.u32 %v1593, 2147483648
    %v1616 = vmul.f32 %v1615, 1.442695
    %v1617 = vpow.pop %v1616
    %v1618 = vadd.f32 %v1617, 1.0
    %v1619 = vrcp.pop %v1618
    %v1620 = vmul.f32 %v1618, %v1619
    %v1621 = vsub.f32 1.0, %v1620
    %v1622 = vmul.f32 %v1619, %v1621
    %v1623 = vadd.f32 %v1619, %v1622
    %vm1624 = vweird.f32 %v1618
    %vm1625 = vweird.f32 %v1619
    %vm1626 = vmor %vm1624, %vm1625
    %v1627 = vsel %vm1626, %v1619, %v1623
    %v1628 = vand.u32 2147483647, %v1618
    %vm1629 = vcmp.eq.f32.partialorder %v1628, 8.507059e+37
    %v1630 = vand.u32 %v1618, 2147483648
    %v1631 = vor.u32 1.1754944e-38, %v1630
    %v1632 = vsel %vm1629, %v1631, %v1627
    %v1633 = vmul.f32 1.0, %v1632
    %v1634 = vtanh.pop %v1594
    %v1635 = vxor.u32 %v1595, 2147483648
    %v1636 = vmul.f32 %v1635, 1.442695
    %v1637 = vpow.pop %v1636
    %v1638 = vadd.f32 %v1637, 1.0
    %v1639 = vrcp.pop %v1638
    %v1640 = vmul.f32 %v1638, %v1639
    %v1641 = vsub.f32 1.0, %v1640
    %v1642 = vmul.f32 %v1639, %v1641
    %v1643 = vadd.f32 %v1639, %v1642
    %vm1644 = vweird.f32 %v1638
    %vm1645 = vweird.f32 %v1639
    %vm1646 = vmor %vm1644, %vm1645
    %v1647 = vsel %vm1646, %v1639, %v1643
    %v1648 = vand.u32 2147483647, %v1638
    %vm1649 = vcmp.eq.f32.partialorder %v1648, 8.507059e+37
    %v1650 = vand.u32 %v1638, 2147483648
    %v1651 = vor.u32 1.1754944e-38, %v1650
    %v1652 = vsel %vm1649, %v1651, %v1647
    %v1653 = vmul.f32 1.0, %v1652
    %v1654 = vmul.f32 %v1633, %v1509
    %v1655 = vmul.f32 %v1614, %v1634
    %v1656 = vadd.f32 %v1654, %v1655
    %v1657 = vtanh.pop %v1656
    %v1658 = vmul.f32 %v1653, %v1657
    %v1659 = vld [vmem:[#allocation7] sm:$0xff]
    %v1660 = vld [vmem:[#allocation7 + $0x8] sm:$0xff]
    %v1661 = vld [vmem:[#allocation7 + $0x10] sm:$0xff]
    %v1662 = vld [vmem:[#allocation7 + $0x18] sm:$0xff]
    %v1663 = vld [vmem:[#allocation7 + $0x20] sm:$0xff]
    %v1664 = vld [vmem:[#allocation7 + $0x28] sm:$0xff]
    %v1665 = vld [vmem:[#allocation7 + $0x30] sm:$0xff]
    %v1666 = vld [vmem:[#allocation7 + $0x38] sm:$0xff]
    %v1667 = vld [vmem:[#allocation7 + $0x40] sm:$0xff]
    %v1668 = vld [vmem:[#allocation7 + $0x48] sm:$0xff]
    %v1669 = vld [vmem:[#allocation7 + $0x50] sm:$0xff]
    %v1670 = vld [vmem:[#allocation7 + $0x58] sm:$0xff]
    %v1671 = vld [vmem:[#allocation7 + $0x60] sm:$0xff]
    %v1672 = vld [vmem:[#allocation7 + $0x68] sm:$0xff]
    %v1673 = vld [vmem:[#allocation7 + $0x70] sm:$0xff]
    %v1674 = vld [vmem:[#allocation7 + $0x78] sm:$0xff]
    %v1675 = vld [vmem:[#allocation7 + $0x80] sm:$0xff]
    %v1676 = vld [vmem:[#allocation7 + $0x88] sm:$0xff]
    %v1677 = vld [vmem:[#allocation7 + $0x90] sm:$0xff]
    %v1678 = vld [vmem:[#allocation7 + $0x98] sm:$0xff]
    %v1679 = vld [vmem:[#allocation7 + $0xa0] sm:$0xff]
    %v1680 = vld [vmem:[#allocation7 + $0xa8] sm:$0xff]
    %v1681 = vld [vmem:[#allocation7 + $0xb0] sm:$0xff]
    %v1682 = vld [vmem:[#allocation7 + $0xb8] sm:$0xff]
    %v1683 = vld [vmem:[#allocation7 + $0xc0] sm:$0xff]
    %v1684 = vld [vmem:[#allocation7 + $0xc8] sm:$0xff]
    %v1685 = vld [vmem:[#allocation7 + $0xd0] sm:$0xff]
    %v1686 = vld [vmem:[#allocation7 + $0xd8] sm:$0xff]
    %v1687 = vld [vmem:[#allocation7 + $0xe0] sm:$0xff]
    %v1688 = vld [vmem:[#allocation7 + $0xe8] sm:$0xff]
    %v1689 = vld [vmem:[#allocation7 + $0xf0] sm:$0xff]
    %v1690 = vld [vmem:[#allocation7 + $0xf8] sm:$0xff]
    %v1691 = vld [vmem:[#allocation7 + $0x100] sm:$0xff]
    %v1692 = vld [vmem:[#allocation7 + $0x108] sm:$0xff]
    %v1693 = vld [vmem:[#allocation7 + $0x110] sm:$0xff]
    %v1694 = vld [vmem:[#allocation7 + $0x118] sm:$0xff]
    %v1695 = vld [vmem:[#allocation7 + $0x120] sm:$0xff]
    %v1696 = vld [vmem:[#allocation7 + $0x128] sm:$0xff]
    %v1697 = vld [vmem:[#allocation7 + $0x130] sm:$0xff]
    %v1698 = vld [vmem:[#allocation7 + $0x138] sm:$0xff]
    %v1699 = vld [vmem:[#allocation7 + $0x140] sm:$0xff]
    %v1700 = vld [vmem:[#allocation7 + $0x148] sm:$0xff]
    %v1701 = vld [vmem:[#allocation7 + $0x150] sm:$0xff]
    %v1702 = vld [vmem:[#allocation7 + $0x158] sm:$0xff]
    %v1703 = vld [vmem:[#allocation7 + $0x160] sm:$0xff]
    %v1704 = vld [vmem:[#allocation7 + $0x168] sm:$0xff]
    %v1705 = vld [vmem:[#allocation7 + $0x170] sm:$0xff]
    %v1706 = vld [vmem:[#allocation7 + $0x178] sm:$0xff]
    %v1707 = vld [vmem:[#allocation7 + $0x180] sm:$0xff]
    %v1708 = vld [vmem:[#allocation7 + $0x188] sm:$0xff]
    %v1709 = vld [vmem:[#allocation7 + $0x190] sm:$0xff]
    %v1710 = vld [vmem:[#allocation7 + $0x198] sm:$0xff]
    %v1711 = vld [vmem:[#allocation7 + $0x1a0] sm:$0xff]
    %v1712 = vld [vmem:[#allocation7 + $0x1a8] sm:$0xff]
    %v1713 = vld [vmem:[#allocation7 + $0x1b0] sm:$0xff]
    %v1714 = vld [vmem:[#allocation7 + $0x1b8] sm:$0xff]
    %v1715 = vld [vmem:[#allocation7 + $0x1c0] sm:$0xff]
    %v1716 = vld [vmem:[#allocation7 + $0x1c8] sm:$0xff]
    %v1717 = vld [vmem:[#allocation7 + $0x1d0] sm:$0xff]
    %v1718 = vld [vmem:[#allocation7 + $0x1d8] sm:$0xff]
    %v1719 = vld [vmem:[#allocation7 + $0x1e0] sm:$0xff]
    %v1720 = vld [vmem:[#allocation7 + $0x1e8] sm:$0xff]
    %v1721 = vld [vmem:[#allocation7 + $0x1f0] sm:$0xff]
    %v1722 = vld [vmem:[#allocation7 + $0x1f8] sm:$0xff]
    %v1723 = vld [vmem:[%s9] sm:$0xf]
    %v1725 = vperm.slane %v1723, 0
    %v1726 = vperm.slane %v1723, 1
    %v1727 = vperm.slane %v1723, 2
    %v1728 = vperm.slane %v1723, 3
    %1733 = vmatpush.msra.mxu0 %v1719
    %1734 = vmatpush.msra.mxu0 %v1715
    %1735 = vmatpush.msra.mxu0 %v1711
    %1736 = vmatpush.msra.mxu0 %v1707
    %1737 = vmatpush.msra.mxu0 %v1703
    %1738 = vmatpush.msra.mxu0 %v1699
    %1739 = vmatpush.msra.mxu0 %v1695
    %1740 = vmatpush.msra.mxu0 %v1691
    %1741 = vmatpush.msra.mxu0 %v1687
    %1742 = vmatpush.msra.mxu0 %v1683
    %1743 = vmatpush.msra.mxu0 %v1679
    %1744 = vmatpush.msra.mxu0 %v1675
    %1745 = vmatpush.msra.mxu0 %v1671
    %1746 = vmatpush.msra.mxu0 %v1667
    %1747 = vmatpush.msra.mxu0 %v1663
    %1748 = vmatpush.msra.mxu0 %v1659
    %1749 = vmatmul.f32.gmra.mxu0 %v1511
    %v1750 = vpop.f32.mrf.mxu0
    %v1751 = vadd.f32 %v1725, %v1750
    %1752 = vmatmul.f32.gmra.mxu0 %v1658
    %v1753 = vpop.f32.mrf.mxu0
    %v1754 = vadd.f32 %v1725, %v1753
    %1755 = vdwg.mxu0
    %1756 = vmatpush.msra.mxu0 %v1720
    %1757 = vmatpush.msra.mxu0 %v1716
    %1758 = vmatpush.msra.mxu0 %v1712
    %1759 = vmatpush.msra.mxu0 %v1708
    %1760 = vmatpush.msra.mxu0 %v1704
    %1761 = vmatpush.msra.mxu0 %v1700
    %1762 = vmatpush.msra.mxu0 %v1696
    %1763 = vmatpush.msra.mxu0 %v1692
    %1764 = vmatpush.msra.mxu0 %v1688
    %1765 = vmatpush.msra.mxu0 %v1684
    %1766 = vmatpush.msra.mxu0 %v1680
    %1767 = vmatpush.msra.mxu0 %v1676
    %1768 = vmatpush.msra.mxu0 %v1672
    %1769 = vmatpush.msra.mxu0 %v1668
    %1770 = vmatpush.msra.mxu0 %v1664
    %1771 = vmatpush.msra.mxu0 %v1660
    %1772 = vmatmul.f32.gmra.mxu0 %v1511
    %v1773 = vpop.f32.mrf.mxu0
    %v1774 = vadd.f32 %v1726, %v1773
    %1775 = vmatmul.f32.gmra.mxu0 %v1658
    %v1776 = vpop.f32.mrf.mxu0
    %v1777 = vadd.f32 %v1726, %v1776
    %1778 = vdwg.mxu0
    %1779 = vmatpush.msra.mxu0 %v1721
    %1780 = vmatpush.msra.mxu0 %v1717
    %1781 = vmatpush.msra.mxu0 %v1713
    %1782 = vmatpush.msra.mxu0 %v1709
    %1783 = vmatpush.msra.mxu0 %v1705
    %1784 = vmatpush.msra.mxu0 %v1701
    %1785 = vmatpush.msra.mxu0 %v1697
    %1786 = vmatpush.msra.mxu0 %v1693
    %1787 = vmatpush.msra.mxu0 %v1689
    %1788 = vmatpush.msra.mxu0 %v1685
    %1789 = vmatpush.msra.mxu0 %v1681
    %1790 = vmatpush.msra.mxu0 %v1677
    %1791 = vmatpush.msra.mxu0 %v1673
    %1792 = vmatpush.msra.mxu0 %v1669
    %1793 = vmatpush.msra.mxu0 %v1665
    %1794 = vmatpush.msra.mxu0 %v1661
    %1795 = vmatmul.f32.gmra.mxu0 %v1511
    %v1796 = vpop.f32.mrf.mxu0
    %v1797 = vadd.f32 %v1727, %v1796
    %1798 = vmatmul.f32.gmra.mxu0 %v1658
    %v1799 = vpop.f32.mrf.mxu0
    %v1800 = vadd.f32 %v1727, %v1799
    %1801 = vdwg.mxu0
    %1802 = vmatpush.msra.mxu0 %v1722
    %1803 = vmatpush.msra.mxu0 %v1718
    %1804 = vmatpush.msra.mxu0 %v1714
    %1805 = vmatpush.msra.mxu0 %v1710
    %1806 = vmatpush.msra.mxu0 %v1706
    %1807 = vmatpush.msra.mxu0 %v1702
    %1808 = vmatpush.msra.mxu0 %v1698
    %1809 = vmatpush.msra.mxu0 %v1694
    %1810 = vmatpush.msra.mxu0 %v1690
    %1811 = vmatpush.msra.mxu0 %v1686
    %1812 = vmatpush.msra.mxu0 %v1682
    %1813 = vmatpush.msra.mxu0 %v1678
    %1814 = vmatpush.msra.mxu0 %v1674
    %1815 = vmatpush.msra.mxu0 %v1670
    %1816 = vmatpush.msra.mxu0 %v1666
    %1817 = vmatpush.msra.mxu0 %v1662
    %1818 = vmatmul.f32.gmra.mxu0 %v1511
    %v1819 = vpop.f32.mrf.mxu0
    %v1820 = vadd.f32 %v1728, %v1819
    %1821 = vmatmul.f32.gmra.mxu0 %v1658
    %v1822 = vpop.f32.mrf.mxu0
    %v1823 = vadd.f32 %v1728, %v1822
    %1824 = vdwg.mxu0
    %v1825 = vld [vmem:[#allocation9] sm:$0xff]
    %v1826 = vld [vmem:[#allocation9 + $0x8] sm:$0xff]
    %v1827 = vld [vmem:[#allocation9 + $0x10] sm:$0xff]
    %v1828 = vld [vmem:[#allocation9 + $0x18] sm:$0xff]
    %v1829 = vld [vmem:[#allocation9 + $0x20] sm:$0xff]
    %v1830 = vld [vmem:[#allocation9 + $0x28] sm:$0xff]
    %v1831 = vld [vmem:[#allocation9 + $0x30] sm:$0xff]
    %v1832 = vld [vmem:[#allocation9 + $0x38] sm:$0xff]
    %v1833 = vld [vmem:[#allocation9 + $0x40] sm:$0xff]
    %v1834 = vld [vmem:[#allocation9 + $0x48] sm:$0xff]
    %v1835 = vld [vmem:[#allocation9 + $0x50] sm:$0xff]
    %v1836 = vld [vmem:[#allocation9 + $0x58] sm:$0xff]
    %v1837 = vld [vmem:[#allocation9 + $0x60] sm:$0xff]
    %v1838 = vld [vmem:[#allocation9 + $0x68] sm:$0xff]
    %v1839 = vld [vmem:[#allocation9 + $0x70] sm:$0xff]
    %v1840 = vld [vmem:[#allocation9 + $0x78] sm:$0xff]
    %v1841 = vld [vmem:[#allocation9 + $0x80] sm:$0xff]
    %v1842 = vld [vmem:[#allocation9 + $0x88] sm:$0xff]
    %v1843 = vld [vmem:[#allocation9 + $0x90] sm:$0xff]
    %v1844 = vld [vmem:[#allocation9 + $0x98] sm:$0xff]
    %v1845 = vld [vmem:[#allocation9 + $0xa0] sm:$0xff]
    %v1846 = vld [vmem:[#allocation9 + $0xa8] sm:$0xff]
    %v1847 = vld [vmem:[#allocation9 + $0xb0] sm:$0xff]
    %v1848 = vld [vmem:[#allocation9 + $0xb8] sm:$0xff]
    %v1849 = vld [vmem:[#allocation9 + $0xc0] sm:$0xff]
    %v1850 = vld [vmem:[#allocation9 + $0xc8] sm:$0xff]
    %v1851 = vld [vmem:[#allocation9 + $0xd0] sm:$0xff]
    %v1852 = vld [vmem:[#allocation9 + $0xd8] sm:$0xff]
    %v1853 = vld [vmem:[#allocation9 + $0xe0] sm:$0xff]
    %v1854 = vld [vmem:[#allocation9 + $0xe8] sm:$0xff]
    %v1855 = vld [vmem:[#allocation9 + $0xf0] sm:$0xff]
    %v1856 = vld [vmem:[#allocation9 + $0xf8] sm:$0xff]
    %v1857 = vld [vmem:[#allocation9 + $0x100] sm:$0xff]
    %v1858 = vld [vmem:[#allocation9 + $0x108] sm:$0xff]
    %v1859 = vld [vmem:[#allocation9 + $0x110] sm:$0xff]
    %v1860 = vld [vmem:[#allocation9 + $0x118] sm:$0xff]
    %v1861 = vld [vmem:[#allocation9 + $0x120] sm:$0xff]
    %v1862 = vld [vmem:[#allocation9 + $0x128] sm:$0xff]
    %v1863 = vld [vmem:[#allocation9 + $0x130] sm:$0xff]
    %v1864 = vld [vmem:[#allocation9 + $0x138] sm:$0xff]
    %v1865 = vld [vmem:[#allocation9 + $0x140] sm:$0xff]
    %v1866 = vld [vmem:[#allocation9 + $0x148] sm:$0xff]
    %v1867 = vld [vmem:[#allocation9 + $0x150] sm:$0xff]
    %v1868 = vld [vmem:[#allocation9 + $0x158] sm:$0xff]
    %v1869 = vld [vmem:[#allocation9 + $0x160] sm:$0xff]
    %v1870 = vld [vmem:[#allocation9 + $0x168] sm:$0xff]
    %v1871 = vld [vmem:[#allocation9 + $0x170] sm:$0xff]
    %v1872 = vld [vmem:[#allocation9 + $0x178] sm:$0xff]
    %v1873 = vld [vmem:[#allocation9 + $0x180] sm:$0xff]
    %v1874 = vld [vmem:[#allocation9 + $0x188] sm:$0xff]
    %v1875 = vld [vmem:[#allocation9 + $0x190] sm:$0xff]
    %v1876 = vld [vmem:[#allocation9 + $0x198] sm:$0xff]
    %v1877 = vld [vmem:[#allocation9 + $0x1a0] sm:$0xff]
    %v1878 = vld [vmem:[#allocation9 + $0x1a8] sm:$0xff]
    %v1879 = vld [vmem:[#allocation9 + $0x1b0] sm:$0xff]
    %v1880 = vld [vmem:[#allocation9 + $0x1b8] sm:$0xff]
    %v1881 = vld [vmem:[#allocation9 + $0x1c0] sm:$0xff]
    %v1882 = vld [vmem:[#allocation9 + $0x1c8] sm:$0xff]
    %v1883 = vld [vmem:[#allocation9 + $0x1d0] sm:$0xff]
    %v1884 = vld [vmem:[#allocation9 + $0x1d8] sm:$0xff]
    %v1885 = vld [vmem:[#allocation9 + $0x1e0] sm:$0xff]
    %v1886 = vld [vmem:[#allocation9 + $0x1e8] sm:$0xff]
    %v1887 = vld [vmem:[#allocation9 + $0x1f0] sm:$0xff]
    %v1888 = vld [vmem:[#allocation9 + $0x1f8] sm:$0xff]
    %1889 = vmatpush.msra.mxu0 %v1885
    %1890 = vmatpush.msra.mxu0 %v1881
    %1891 = vmatpush.msra.mxu0 %v1877
    %1892 = vmatpush.msra.mxu0 %v1873
    %1893 = vmatpush.msra.mxu0 %v1869
    %1894 = vmatpush.msra.mxu0 %v1865
    %1895 = vmatpush.msra.mxu0 %v1861
    %1896 = vmatpush.msra.mxu0 %v1857
    %1897 = vmatpush.msra.mxu0 %v1853
    %1898 = vmatpush.msra.mxu0 %v1849
    %1899 = vmatpush.msra.mxu0 %v1845
    %1900 = vmatpush.msra.mxu0 %v1841
    %1901 = vmatpush.msra.mxu0 %v1837
    %1902 = vmatpush.msra.mxu0 %v1833
    %1903 = vmatpush.msra.mxu0 %v1829
    %1904 = vmatpush.msra.mxu0 %v1825
    %1905 = vmatmul.f32.gmra.mxu0 0.0
    %v1906 = vpop.f32.mrf.mxu0
    %v1907 = vadd.f32 0.0, %v1906
    %1908 = vdwg.mxu0
    %1909 = vmatpush.msra.mxu0 %v1886
    %1910 = vmatpush.msra.mxu0 %v1882
    %1911 = vmatpush.msra.mxu0 %v1878
    %1912 = vmatpush.msra.mxu0 %v1874
    %1913 = vmatpush.msra.mxu0 %v1870
    %1914 = vmatpush.msra.mxu0 %v1866
    %1915 = vmatpush.msra.mxu0 %v1862
    %1916 = vmatpush.msra.mxu0 %v1858
    %1917 = vmatpush.msra.mxu0 %v1854
    %1918 = vmatpush.msra.mxu0 %v1850
    %1919 = vmatpush.msra.mxu0 %v1846
    %1920 = vmatpush.msra.mxu0 %v1842
    %1921 = vmatpush.msra.mxu0 %v1838
    %1922 = vmatpush.msra.mxu0 %v1834
    %1923 = vmatpush.msra.mxu0 %v1830
    %1924 = vmatpush.msra.mxu0 %v1826
    %1925 = vmatmul.f32.gmra.mxu0 0.0
    %v1926 = vpop.f32.mrf.mxu0
    %v1927 = vadd.f32 0.0, %v1926
    %1928 = vdwg.mxu0
    %1929 = vmatpush.msra.mxu0 %v1887
    %1930 = vmatpush.msra.mxu0 %v1883
    %1931 = vmatpush.msra.mxu0 %v1879
    %1932 = vmatpush.msra.mxu0 %v1875
    %1933 = vmatpush.msra.mxu0 %v1871
    %1934 = vmatpush.msra.mxu0 %v1867
    %1935 = vmatpush.msra.mxu0 %v1863
    %1936 = vmatpush.msra.mxu0 %v1859
    %1937 = vmatpush.msra.mxu0 %v1855
    %1938 = vmatpush.msra.mxu0 %v1851
    %1939 = vmatpush.msra.mxu0 %v1847
    %1940 = vmatpush.msra.mxu0 %v1843
    %1941 = vmatpush.msra.mxu0 %v1839
    %1942 = vmatpush.msra.mxu0 %v1835
    %1943 = vmatpush.msra.mxu0 %v1831
    %1944 = vmatpush.msra.mxu0 %v1827
    %1945 = vmatmul.f32.gmra.mxu0 0.0
    %v1946 = vpop.f32.mrf.mxu0
    %v1947 = vadd.f32 0.0, %v1946
    %1948 = vdwg.mxu0
    %1949 = vmatpush.msra.mxu0 %v1888
    %1950 = vmatpush.msra.mxu0 %v1884
    %1951 = vmatpush.msra.mxu0 %v1880
    %1952 = vmatpush.msra.mxu0 %v1876
    %1953 = vmatpush.msra.mxu0 %v1872
    %1954 = vmatpush.msra.mxu0 %v1868
    %1955 = vmatpush.msra.mxu0 %v1864
    %1956 = vmatpush.msra.mxu0 %v1860
    %1957 = vmatpush.msra.mxu0 %v1856
    %1958 = vmatpush.msra.mxu0 %v1852
    %1959 = vmatpush.msra.mxu0 %v1848
    %1960 = vmatpush.msra.mxu0 %v1844
    %1961 = vmatpush.msra.mxu0 %v1840
    %1962 = vmatpush.msra.mxu0 %v1836
    %1963 = vmatpush.msra.mxu0 %v1832
    %1964 = vmatpush.msra.mxu0 %v1828
    %1965 = vmatmul.f32.gmra.mxu0 0.0
    %v1966 = vpop.f32.mrf.mxu0
    %v1967 = vadd.f32 0.0, %v1966
    %1968 = vdwg.mxu0
    %v1969 = vadd.f32 %v1751, %v1907
    %v1970 = vadd.f32 %v1774, %v1927
    %v1971 = vadd.f32 %v1797, %v1947
    %v1972 = vadd.f32 %v1820, %v1967
    %v1973 = vxor.u32 %v1969, 2147483648
    %v1974 = vmul.f32 %v1973, 1.442695
    %v1975 = vpow.pop %v1974
    %v1976 = vadd.f32 %v1975, 1.0
    %v1977 = vrcp.pop %v1976
    %v1978 = vmul.f32 %v1976, %v1977
    %v1979 = vsub.f32 1.0, %v1978
    %v1980 = vmul.f32 %v1977, %v1979
    %v1981 = vadd.f32 %v1977, %v1980
    %vm1982 = vweird.f32 %v1976
    %vm1983 = vweird.f32 %v1977
    %vm1984 = vmor %vm1982, %vm1983
    %v1985 = vsel %vm1984, %v1977, %v1981
    %v1986 = vand.u32 2147483647, %v1976
    %vm1987 = vcmp.eq.f32.partialorder %v1986, 8.507059e+37
    %v1988 = vand.u32 %v1976, 2147483648
    %v1989 = vor.u32 1.1754944e-38, %v1988
    %v1990 = vsel %vm1987, %v1989, %v1985
    %v1991 = vmul.f32 1.0, %v1990
    %v1992 = vxor.u32 %v1970, 2147483648
    %v1993 = vmul.f32 %v1992, 1.442695
    %v1994 = vpow.pop %v1993
    %v1995 = vadd.f32 %v1994, 1.0
    %v1996 = vrcp.pop %v1995
    %v1997 = vmul.f32 %v1995, %v1996
    %v1998 = vsub.f32 1.0, %v1997
    %v1999 = vmul.f32 %v1996, %v1998
    %v2000 = vadd.f32 %v1996, %v1999
    %vm2001 = vweird.f32 %v1995
    %vm2002 = vweird.f32 %v1996
    %vm2003 = vmor %vm2001, %vm2002
    %v2004 = vsel %vm2003, %v1996, %v2000
    %v2005 = vand.u32 2147483647, %v1995
    %vm2006 = vcmp.eq.f32.partialorder %v2005, 8.507059e+37
    %v2007 = vand.u32 %v1995, 2147483648
    %v2008 = vor.u32 1.1754944e-38, %v2007
    %v2009 = vsel %vm2006, %v2008, %v2004
    %v2010 = vmul.f32 1.0, %v2009
    %v2011 = vtanh.pop %v1971
    %v2012 = vxor.u32 %v1972, 2147483648
    %v2013 = vmul.f32 %v2012, 1.442695
    %v2014 = vpow.pop %v2013
    %v2015 = vadd.f32 %v2014, 1.0
    %v2016 = vrcp.pop %v2015
    %v2017 = vmul.f32 %v2015, %v2016
    %v2018 = vsub.f32 1.0, %v2017
    %v2019 = vmul.f32 %v2016, %v2018
    %v2020 = vadd.f32 %v2016, %v2019
    %vm2021 = vweird.f32 %v2015
    %vm2022 = vweird.f32 %v2016
    %vm2023 = vmor %vm2021, %vm2022
    %v2024 = vsel %vm2023, %v2016, %v2020
    %v2025 = vand.u32 2147483647, %v2015
    %vm2026 = vcmp.eq.f32.partialorder %v2025, 8.507059e+37
    %v2027 = vand.u32 %v2015, 2147483648
    %v2028 = vor.u32 1.1754944e-38, %v2027
    %v2029 = vsel %vm2026, %v2028, %v2024
    %v2030 = vmul.f32 1.0, %v2029
    %v2031 = vmul.f32 %v2010, 0.0
    %v2032 = vmul.f32 %v1991, %v2011
    %v2033 = vadd.f32 %v2031, %v2032
    %v2034 = vtanh.pop %v2033
    %v2035 = vmul.f32 %v2030, %v2034
    %2036 = vmatpush.msra.mxu0 %v1885
    %2037 = vmatpush.msra.mxu0 %v1881
    %2038 = vmatpush.msra.mxu0 %v1877
    %2039 = vmatpush.msra.mxu0 %v1873
    %2040 = vmatpush.msra.mxu0 %v1869
    %2041 = vmatpush.msra.mxu0 %v1865
    %2042 = vmatpush.msra.mxu0 %v1861
    %2043 = vmatpush.msra.mxu0 %v1857
    %2044 = vmatpush.msra.mxu0 %v1853
    %2045 = vmatpush.msra.mxu0 %v1849
    %2046 = vmatpush.msra.mxu0 %v1845
    %2047 = vmatpush.msra.mxu0 %v1841
    %2048 = vmatpush.msra.mxu0 %v1837
    %2049 = vmatpush.msra.mxu0 %v1833
    %2050 = vmatpush.msra.mxu0 %v1829
    %2051 = vmatpush.msra.mxu0 %v1825
    %2052 = vmatmul.f32.gmra.mxu0 %v2035
    %v2053 = vpop.f32.mrf.mxu0
    %v2054 = vadd.f32 0.0, %v2053
    %2055 = vdwg.mxu0
    %2056 = vmatpush.msra.mxu0 %v1886
    %2057 = vmatpush.msra.mxu0 %v1882
    %2058 = vmatpush.msra.mxu0 %v1878
    %2059 = vmatpush.msra.mxu0 %v1874
    %2060 = vmatpush.msra.mxu0 %v1870
    %2061 = vmatpush.msra.mxu0 %v1866
    %2062 = vmatpush.msra.mxu0 %v1862
    %2063 = vmatpush.msra.mxu0 %v1858
    %2064 = vmatpush.msra.mxu0 %v1854
    %2065 = vmatpush.msra.mxu0 %v1850
    %2066 = vmatpush.msra.mxu0 %v1846
    %2067 = vmatpush.msra.mxu0 %v1842
    %2068 = vmatpush.msra.mxu0 %v1838
    %2069 = vmatpush.msra.mxu0 %v1834
    %2070 = vmatpush.msra.mxu0 %v1830
    %2071 = vmatpush.msra.mxu0 %v1826
    %2072 = vmatmul.f32.gmra.mxu0 %v2035
    %v2073 = vpop.f32.mrf.mxu0
    %v2074 = vadd.f32 0.0, %v2073
    %2075 = vdwg.mxu0
    %2076 = vmatpush.msra.mxu0 %v1887
    %2077 = vmatpush.msra.mxu0 %v1883
    %2078 = vmatpush.msra.mxu0 %v1879
    %2079 = vmatpush.msra.mxu0 %v1875
    %2080 = vmatpush.msra.mxu0 %v1871
    %2081 = vmatpush.msra.mxu0 %v1867
    %2082 = vmatpush.msra.mxu0 %v1863
    %2083 = vmatpush.msra.mxu0 %v1859
    %2084 = vmatpush.msra.mxu0 %v1855
    %2085 = vmatpush.msra.mxu0 %v1851
    %2086 = vmatpush.msra.mxu0 %v1847
    %2087 = vmatpush.msra.mxu0 %v1843
    %2088 = vmatpush.msra.mxu0 %v1839
    %2089 = vmatpush.msra.mxu0 %v1835
    %2090 = vmatpush.msra.mxu0 %v1831
    %2091 = vmatpush.msra.mxu0 %v1827
    %2092 = vmatmul.f32.gmra.mxu0 %v2035
    %v2093 = vpop.f32.mrf.mxu0
    %v2094 = vadd.f32 0.0, %v2093
    %2095 = vdwg.mxu0
    %2096 = vmatpush.msra.mxu0 %v1888
    %2097 = vmatpush.msra.mxu0 %v1884
    %2098 = vmatpush.msra.mxu0 %v1880
    %2099 = vmatpush.msra.mxu0 %v1876
    %2100 = vmatpush.msra.mxu0 %v1872
    %2101 = vmatpush.msra.mxu0 %v1868
    %2102 = vmatpush.msra.mxu0 %v1864
    %2103 = vmatpush.msra.mxu0 %v1860
    %2104 = vmatpush.msra.mxu0 %v1856
    %2105 = vmatpush.msra.mxu0 %v1852
    %2106 = vmatpush.msra.mxu0 %v1848
    %2107 = vmatpush.msra.mxu0 %v1844
    %2108 = vmatpush.msra.mxu0 %v1840
    %2109 = vmatpush.msra.mxu0 %v1836
    %2110 = vmatpush.msra.mxu0 %v1832
    %2111 = vmatpush.msra.mxu0 %v1828
    %2112 = vmatmul.f32.gmra.mxu0 %v2035
    %v2113 = vpop.f32.mrf.mxu0
    %v2114 = vadd.f32 0.0, %v2113
    %2115 = vdwg.mxu0
    %v2116 = vadd.f32 %v1754, %v2054
    %v2117 = vadd.f32 %v1777, %v2074
    %v2118 = vadd.f32 %v1800, %v2094
    %v2119 = vadd.f32 %v1823, %v2114
    %v2120 = vxor.u32 %v2116, 2147483648
    %v2121 = vmul.f32 %v2120, 1.442695
    %v2122 = vpow.pop %v2121
    %v2123 = vadd.f32 %v2122, 1.0
    %v2124 = vrcp.pop %v2123
    %v2125 = vmul.f32 %v2123, %v2124
    %v2126 = vsub.f32 1.0, %v2125
    %v2127 = vmul.f32 %v2124, %v2126
    %v2128 = vadd.f32 %v2124, %v2127
    %vm2129 = vweird.f32 %v2123
    %vm2130 = vweird.f32 %v2124
    %vm2131 = vmor %vm2129, %vm2130
    %v2132 = vsel %vm2131, %v2124, %v2128
    %v2133 = vand.u32 2147483647, %v2123
    %vm2134 = vcmp.eq.f32.partialorder %v2133, 8.507059e+37
    %v2135 = vand.u32 %v2123, 2147483648
    %v2136 = vor.u32 1.1754944e-38, %v2135
    %v2137 = vsel %vm2134, %v2136, %v2132
    %v2138 = vmul.f32 1.0, %v2137
    %v2139 = vxor.u32 %v2117, 2147483648
    %v2140 = vmul.f32 %v2139, 1.442695
    %v2141 = vpow.pop %v2140
    %v2142 = vadd.f32 %v2141, 1.0
    %v2143 = vrcp.pop %v2142
    %v2144 = vmul.f32 %v2142, %v2143
    %v2145 = vsub.f32 1.0, %v2144
    %v2146 = vmul.f32 %v2143, %v2145
    %v2147 = vadd.f32 %v2143, %v2146
    %vm2148 = vweird.f32 %v2142
    %vm2149 = vweird.f32 %v2143
    %vm2150 = vmor %vm2148, %vm2149
    %v2151 = vsel %vm2150, %v2143, %v2147
    %v2152 = vand.u32 2147483647, %v2142
    %vm2153 = vcmp.eq.f32.partialorder %v2152, 8.507059e+37
    %v2154 = vand.u32 %v2142, 2147483648
    %v2155 = vor.u32 1.1754944e-38, %v2154
    %v2156 = vsel %vm2153, %v2155, %v2151
    %v2157 = vmul.f32 1.0, %v2156
    %v2158 = vtanh.pop %v2118
    %v2159 = vxor.u32 %v2119, 2147483648
    %v2160 = vmul.f32 %v2159, 1.442695
    %v2161 = vpow.pop %v2160
    %v2162 = vadd.f32 %v2161, 1.0
    %v2163 = vrcp.pop %v2162
    %v2164 = vmul.f32 %v2162, %v2163
    %v2165 = vsub.f32 1.0, %v2164
    %v2166 = vmul.f32 %v2163, %v2165
    %v2167 = vadd.f32 %v2163, %v2166
    %vm2168 = vweird.f32 %v2162
    %vm2169 = vweird.f32 %v2163
    %vm2170 = vmor %vm2168, %vm2169
    %v2171 = vsel %vm2170, %v2163, %v2167
    %v2172 = vand.u32 2147483647, %v2162
    %vm2173 = vcmp.eq.f32.partialorder %v2172, 8.507059e+37
    %v2174 = vand.u32 %v2162, 2147483648
    %v2175 = vor.u32 1.1754944e-38, %v2174
    %v2176 = vsel %vm2173, %v2175, %v2171
    %v2177 = vmul.f32 1.0, %v2176
    %v2178 = vmul.f32 %v2157, %v2033
    %v2179 = vmul.f32 %v2138, %v2158
    %v2180 = vadd.f32 %v2178, %v2179
    %v2181 = vtanh.pop %v2180
    %v2182 = vmul.f32 %v2177, %v2181
    %v2183 = vld [vmem:[#allocation10] sm:$0xff]
    %v2184 = vld [vmem:[#allocation10 + $0x8] sm:$0xff]
    %v2185 = vld [vmem:[#allocation10 + $0x10] sm:$0xff]
    %v2186 = vld [vmem:[#allocation10 + $0x18] sm:$0xff]
    %v2187 = vld [vmem:[#allocation10 + $0x20] sm:$0xff]
    %v2188 = vld [vmem:[#allocation10 + $0x28] sm:$0xff]
    %v2189 = vld [vmem:[#allocation10 + $0x30] sm:$0xff]
    %v2190 = vld [vmem:[#allocation10 + $0x38] sm:$0xff]
    %v2191 = vld [vmem:[#allocation10 + $0x40] sm:$0xff]
    %v2192 = vld [vmem:[#allocation10 + $0x48] sm:$0xff]
    %v2193 = vld [vmem:[#allocation10 + $0x50] sm:$0xff]
    %v2194 = vld [vmem:[#allocation10 + $0x58] sm:$0xff]
    %v2195 = vld [vmem:[#allocation10 + $0x60] sm:$0xff]
    %v2196 = vld [vmem:[#allocation10 + $0x68] sm:$0xff]
    %v2197 = vld [vmem:[#allocation10 + $0x70] sm:$0xff]
    %v2198 = vld [vmem:[#allocation10 + $0x78] sm:$0xff]
    %v2199 = vld [vmem:[#allocation10 + $0x80] sm:$0xff]
    %v2200 = vld [vmem:[#allocation10 + $0x88] sm:$0xff]
    %v2201 = vld [vmem:[#allocation10 + $0x90] sm:$0xff]
    %v2202 = vld [vmem:[#allocation10 + $0x98] sm:$0xff]
    %v2203 = vld [vmem:[#allocation10 + $0xa0] sm:$0xff]
    %v2204 = vld [vmem:[#allocation10 + $0xa8] sm:$0xff]
    %v2205 = vld [vmem:[#allocation10 + $0xb0] sm:$0xff]
    %v2206 = vld [vmem:[#allocation10 + $0xb8] sm:$0xff]
    %v2207 = vld [vmem:[#allocation10 + $0xc0] sm:$0xff]
    %v2208 = vld [vmem:[#allocation10 + $0xc8] sm:$0xff]
    %v2209 = vld [vmem:[#allocation10 + $0xd0] sm:$0xff]
    %v2210 = vld [vmem:[#allocation10 + $0xd8] sm:$0xff]
    %v2211 = vld [vmem:[#allocation10 + $0xe0] sm:$0xff]
    %v2212 = vld [vmem:[#allocation10 + $0xe8] sm:$0xff]
    %v2213 = vld [vmem:[#allocation10 + $0xf0] sm:$0xff]
    %v2214 = vld [vmem:[#allocation10 + $0xf8] sm:$0xff]
    %v2215 = vld [vmem:[%s11] sm:$0x3]
    %v2217 = vperm.slane %v2215, 0
    %v2218 = vperm.slane %v2215, 1
    %2221 = vmatpush.msra.mxu0 %v2213
    %2222 = vmatpush.msra.mxu0 %v2211
    %2223 = vmatpush.msra.mxu0 %v2209
    %2224 = vmatpush.msra.mxu0 %v2207
    %2225 = vmatpush.msra.mxu0 %v2205
    %2226 = vmatpush.msra.mxu0 %v2203
    %2227 = vmatpush.msra.mxu0 %v2201
    %2228 = vmatpush.msra.mxu0 %v2199
    %2229 = vmatpush.msra.mxu0 %v2197
    %2230 = vmatpush.msra.mxu0 %v2195
    %2231 = vmatpush.msra.mxu0 %v2193
    %2232 = vmatpush.msra.mxu0 %v2191
    %2233 = vmatpush.msra.mxu0 %v2189
    %2234 = vmatpush.msra.mxu0 %v2187
    %2235 = vmatpush.msra.mxu0 %v2185
    %2236 = vmatpush.msra.mxu0 %v2183
    %2237 = vmatmul.f32.gmra.mxu0 %v2035
    %v2238 = vpop.f32.mrf.mxu0
    %v2239 = vadd.f32 %v2217, %v2238
    %2240 = vmatmul.f32.gmra.mxu0 %v2182
    %v2241 = vpop.f32.mrf.mxu0
    %v2242 = vadd.f32 %v2217, %v2241
    %2243 = vdwg.mxu0
    %2244 = vmatpush.msra.mxu0 %v2214
    %2245 = vmatpush.msra.mxu0 %v2212
    %2246 = vmatpush.msra.mxu0 %v2210
    %2247 = vmatpush.msra.mxu0 %v2208
    %2248 = vmatpush.msra.mxu0 %v2206
    %2249 = vmatpush.msra.mxu0 %v2204
    %2250 = vmatpush.msra.mxu0 %v2202
    %2251 = vmatpush.msra.mxu0 %v2200
    %2252 = vmatpush.msra.mxu0 %v2198
    %2253 = vmatpush.msra.mxu0 %v2196
    %2254 = vmatpush.msra.mxu0 %v2194
    %2255 = vmatpush.msra.mxu0 %v2192
    %2256 = vmatpush.msra.mxu0 %v2190
    %2257 = vmatpush.msra.mxu0 %v2188
    %2258 = vmatpush.msra.mxu0 %v2186
    %2259 = vmatpush.msra.mxu0 %v2184
    %2260 = vmatmul.f32.gmra.mxu0 %v2035
    %v2261 = vpop.f32.mrf.mxu0
    %v2262 = vadd.f32 %v2218, %v2261
    %2263 = vmatmul.f32.gmra.mxu0 %v2182
    %v2264 = vpop.f32.mrf.mxu0
    %v2265 = vadd.f32 %v2218, %v2264
    %2266 = vdwg.mxu0
    %2267 = vst [vmem:[%s12] sm:$0xff] %v2239
    %2268 = vst [vmem:[%s12 + $0x8] sm:$0xff] %v2262
    %2269 = vst [vmem:[%s12 + $0x10] sm:$0xff] %v2242
    %2270 = vst [vmem:[%s12 + $0x18] sm:$0xff] %v2265
    // Predicated region
    $region74: #{language_model_forward.1} parent=1 // pred_check
      _
    $region75: #{language_model_forward.1} parent=1 // pred_check_branch
      %2272 = sbr.rel (0) target = $region77
    $region76: #{language_model_forward.1} parent=1 // pred_region
      _
    $region77: #{language_model_forward.1} parent=1 // pred_fallthru
      _
    // Predicated region
    $region78: #{language_model_forward.1} parent=1 // pred_check
      _
    $region79: #{language_model_forward.1} parent=1 // pred_check_branch
      %2274 = sbr.rel (0) target = $region81
    $region80: #{language_model_forward.1} parent=1 // pred_region
      _
    $region81: #{language_model_forward.1} parent=1 // pred_fallthru
      _
    %2275 = vsyncpa [#allocation3], 1
    %2276 = vsyncpa [#allocation5], 1
    %2277 = vsyncpa [#allocation8], 1
    %2278 = vsyncpa [#allocation11], 1

</llo_original>
